<compile_context>
chip_gen: v7x
topology: tpu7x:2x2x1
jax: 0.10.0
libtpu: 0.0.40
codegen_flags: <defaults>
</compile_context>

<pallas_src>
import jax
import jax.numpy as jnp
from jax import lax
from jax.experimental import pallas as pl
from jax.experimental.pallas import tpu as pltpu

# Static shapes implied by the module (Linear(32*1*812, 2) pins H=2, W=816).
H_IN, W_IN = 2, 816
W2P = 812                                 # width after conv2 + (1,4) pool
C1, C2 = 16, 32
FEAT = C2 * 1 * W2P                       # 25984 == 32*1*812
EPS = 1e-5

W = 896                                   # lane-aligned working width (7 * 128)
TB_MAX = 16                               # max batch elements per grid step


def _shl(v, k):
    """result[..., w] = v[..., w + k]; wrapped values land only in dead tail columns."""
    return pltpu.roll(v, shift=v.shape[-1] - k, axis=v.ndim - 1)


def _cnn_kernel(x_ref, w1_ref, t1_ref, w2_ref, t2_ref, wout_ref, sel_ref,
                bout_ref, o_ref):
    # x_ref: (8, N) slab, rows = [row0<<1, row1<<1, row0, row1, 0,0,0,0]; each batch
    # element occupies lane columns [b*896, (b+1)*896) with zero tail past col 815.
    act1 = x_ref[...]

    # ---- conv1 (1->16, k=2, pad=1) + BN1 + ReLU: one K=8 MXU matmul -> (48, N) ----
    c1 = jnp.dot(w1_ref[...], act1, preferred_element_type=jnp.float32)
    a1 = jnp.maximum(c1 + t1_ref[...], 0.0)          # rows: 3 output rows x 16 ch

    # ---- maxpool 2x2 stride 1: vertical pairwise max first, then horizontal 2-max --
    pv0 = jnp.maximum(a1[0:16, :], a1[16:32, :])
    pv1 = jnp.maximum(a1[16:32, :], a1[32:48, :])
    p1_0 = jnp.maximum(pv0, _shl(pv0, 1))            # (16, N)
    p1_1 = jnp.maximum(pv1, _shl(pv1, 1))            # (16, N)

    # ---- conv2 (16->32, k=2, pad=0) + BN2 + ReLU: one fused K=64 bf16 MXU matmul ----
    act2 = jnp.concatenate(
        [p1_0, _shl(p1_0, 1), p1_1, _shl(p1_1, 1)], axis=0).astype(jnp.bfloat16)
    c2 = jnp.dot(w2_ref[...], act2, preferred_element_type=jnp.float32)   # (32, N)
    a2 = jnp.maximum(c2 + t2_ref[...], 0.0)

    # ---- maxpool (1,4) stride 1 (log-tree: 2 rolls + 2 maxes); valid cols 0..811 ----
    q = jnp.maximum(a2, _shl(a2, 1))
    p2 = jnp.maximum(q, _shl(q, 2))                  # (32, N)

    # ---- Linear(25984 -> 2): full-width weight multiply + MXU segment-sum ----------
    # wout is zero past column 811 of every element segment -> padded-tail garbage is
    # killed here; sel[b*896 + w, b] = 1 sums each element's segment in one matmul.
    sel = sel_ref[...]                               # (N, TB) 0/1 selector
    e0 = jnp.dot(wout_ref[0] * p2, sel, preferred_element_type=jnp.float32)  # (32, TB)
    e1 = jnp.dot(wout_ref[1] * p2, sel, preferred_element_type=jnp.float32)  # (32, TB)
    s0 = jnp.sum(e0, axis=0, keepdims=True)          # (1, TB)
    s1 = jnp.sum(e1, axis=0, keepdims=True)          # (1, TB)
    o_ref[0] = (jnp.concatenate([s0, s1], axis=1) + bout_ref[...]).astype(o_ref.dtype)


def cnn_forward(x, kparams):
    """x: (B, 1, 2, 816) float32 NCHW -> (B, 2) float32."""
    w1m, t1k, w2k, t2k, wout, lb = kparams
    B = x.shape[0]

    # Batch tile: keep >=2 grid steps whenever B >= 2 (both v7x TensorCores), cap TB.
    tb = max(1, min(TB_MAX, pl.cdiv(B, 2)))
    nsteps = pl.cdiv(B, tb)
    bp = nsteps * tb
    n = tb * W

    # Pad batch and width.  Columns >= 816 MUST be zero (the roll-based shifts and the
    # zero-padded Linear weight rely on the dead tail).  Pre-shift the rows by one for
    # conv1's padding=1 and stack [row<<1 ; row ; zeros] so conv1 is a single K=8
    # matmul per step (wrapper-side layout plumbing only).
    xw = jnp.pad(x[:, 0], ((0, bp - B), (0, 0), (0, W - W_IN)))          # (bp, 2, 896)
    xsh = jnp.pad(xw[:, :, :-1], ((0, 0), (0, 0), (1, 0)))               # row >> 1
    xstk = jnp.concatenate(
        [xsh, xw, jnp.zeros_like(xw), jnp.zeros_like(xw)], axis=1)       # (bp, 8, 896)
    xflat = jnp.transpose(xstk, (1, 0, 2)).reshape(8, bp * W)            # (8, bp*896)

    wout_rep = jnp.tile(wout, (1, 1, tb))                                # (2, 32, n)
    sel = jnp.repeat(jnp.eye(tb, dtype=jnp.float32), W, axis=0)          # (n, tb)
    bout = jnp.repeat(lb, tb).reshape(1, 2 * tb)                         # (1, 2*tb)

    flops = bp * (2 * 48 * 8 * W            # conv1 matmul
                  + 2 * C2 * 4 * C1 * W     # conv2 matmul
                  + 2 * 2 * FEAT            # linear (multiply + segment matmuls)
                  + 24 * C2 * W)            # BN shifts / ReLU / pools (approx)
    bytes_accessed = ((xflat.size + wout_rep.size + sel.size
                       + nsteps * 2 * tb) * 4 + w2k.size * 2 + w1m.size * 4)

    out3 = pl.pallas_call(
        _cnn_kernel,
        out_shape=jax.ShapeDtypeStruct((nsteps, 1, 2 * tb), jnp.float32),
        grid_spec=pltpu.PrefetchScalarGridSpec(
            num_scalar_prefetch=0,
            grid=(nsteps,),
            in_specs=[
                pl.BlockSpec((8, n), lambda i: (0, i)),
                pl.BlockSpec((48, 8), lambda i: (0, 0)),
                pl.BlockSpec((48, 1), lambda i: (0, 0)),
                pl.BlockSpec((C2, 4 * C1), lambda i: (0, 0)),
                pl.BlockSpec((C2, 1), lambda i: (0, 0)),
                pl.BlockSpec((2, C2, n), lambda i: (0, 0, 0)),
                pl.BlockSpec((n, tb), lambda i: (0, 0)),
                pl.BlockSpec((1, 2 * tb), lambda i: (0, 0)),
            ],
            out_specs=pl.BlockSpec((1, 1, 2 * tb), lambda i: (i, 0, 0)),
        ),
        compiler_params=pltpu.CompilerParams(
            dimension_semantics=("parallel",),
            vmem_limit_bytes=56 * 1024 * 1024),
        cost_estimate=pl.CostEstimate(
            flops=int(flops), transcendentals=0,
            bytes_accessed=int(bytes_accessed)),
    )(xflat, w1m, t1k, w2k, t2k, wout_rep, sel, bout)

    out = jnp.transpose(out3.reshape(nsteps, 2, tb), (0, 2, 1)).reshape(bp, 2)
    return out[:B]


def init_raw_params(key):
    ks = jax.random.split(key, 10)
    c1w = jax.random.normal(ks[0], (C1, 1, 2, 2), jnp.float32) * 0.1
    c1b = jax.random.normal(ks[1], (C1,), jnp.float32) * 0.1
    g1 = 1.0 + 0.1 * jax.random.normal(ks[2], (C1,), jnp.float32)
    b1 = 0.1 * jax.random.normal(ks[3], (C1,), jnp.float32)
    m1 = jnp.zeros((C1,), jnp.float32)
    v1 = jnp.ones((C1,), jnp.float32)
    c2w = jax.random.normal(ks[4], (C2, C1, 2, 2), jnp.float32) * 0.1
    c2b = jax.random.normal(ks[5], (C2,), jnp.float32) * 0.1
    g2 = 1.0 + 0.1 * jax.random.normal(ks[6], (C2,), jnp.float32)
    b2 = 0.1 * jax.random.normal(ks[7], (C2,), jnp.float32)
    m2 = jnp.zeros((C2,), jnp.float32)
    v2 = jnp.ones((C2,), jnp.float32)
    lw = jax.random.normal(ks[8], (2, FEAT), jnp.float32) * 0.01
    lb = jax.random.normal(ks[9], (2,), jnp.float32) * 0.1
    return (c1w, c1b, g1, b1, m1, v1, c2w, c2b, g2, b2, m2, v2, lw, lb)


def fold_params(raw):
    (c1w, c1b, g1, b1, m1, v1, c2w, c2b, g2, b2, m2, v2, lw, lb) = raw
    s1 = g1 / jnp.sqrt(v1 + EPS)
    t1 = (c1b - m1) * s1 + b1
    s2 = g2 / jnp.sqrt(v2 + EPS)
    t2 = (c2b - m2) * s2 + b2

    # conv1 as a (48, 8) MXU weight: rows = 3 output rows x 16 channels; columns match
    # the input-slab rows [row0<<1, row1<<1, row0, row1, 0,0,0,0].  BN1 scale folded.
    k = c1w[:, 0]                                        # (16, 2, 2)
    z = jnp.zeros((C1,), jnp.float32)
    r_top = jnp.stack([k[:, 1, 0], z, k[:, 1, 1], z], axis=1)
    r_mid = jnp.stack([k[:, 0, 0], k[:, 1, 0], k[:, 0, 1], k[:, 1, 1]], axis=1)
    r_bot = jnp.stack([z, k[:, 0, 0], z, k[:, 0, 1]], axis=1)
    w1m = jnp.concatenate([r_top, r_mid, r_bot], axis=0) * jnp.tile(s1, 3)[:, None]
    w1m = jnp.pad(w1m, ((0, 0), (0, 4)))                 # (48, 8): K padded to 8
    t1k = jnp.tile(t1, 3).reshape(48, 1)

    # conv2 as a (32, 64) bf16 MXU weight, column = (di*2+dj)*16 + ci; BN2 scale folded.
    w2k = (jnp.transpose(c2w, (0, 2, 3, 1)).reshape(C2, 4 * C1)
           * s2[:, None]).astype(jnp.bfloat16)
    t2k = t2.reshape(C2, 1)

    # Linear weight in torch .view(B,-1) order -> (2, 32, 812); zero-pad to the
    # lane-aligned working width W=896 (the zero columns kill padded-tail garbage).
    woutk = jnp.pad(lw.reshape(2, C2, W2P), ((0, 0), (0, 0), (0, W - W2P)))
    return (w1m, t1k, w2k, t2k, woutk, lb)


def reference_forward(x, raw):
    """Pure-JAX reference mirroring the PyTorch module (eval mode)."""
    (c1w, c1b, g1, b1, m1, v1, c2w, c2b, g2, b2, m2, v2, lw, lb) = raw
    dn = ("NCHW", "OIHW", "NCHW")
    hp = lax.Precision.HIGHEST

    y = lax.conv_general_dilated(x, c1w, (1, 1), ((1, 1), (1, 1)),
                                 dimension_numbers=dn, precision=hp)
    y = y + c1b[None, :, None, None]
    y = (y - m1[None, :, None, None]) / jnp.sqrt(v1 + EPS)[None, :, None, None]
    y = y * g1[None, :, None, None] + b1[None, :, None, None]
    y = jnp.maximum(y, 0.0)
    y = lax.reduce_window(y, -jnp.inf, lax.max, (1, 1, 2, 2), (1, 1, 1, 1), "VALID")

    y = lax.conv_general_dilated(y, c2w, (1, 1), ((0, 0), (0, 0)),
                                 dimension_numbers=dn, precision=hp)
    y = y + c2b[None, :, None, None]
    y = (y - m2[None, :, None, None]) / jnp.sqrt(v2 + EPS)[None, :, None, None]
    y = y * g2[None, :, None, None] + b2[None, :, None, None]
    y = jnp.maximum(y, 0.0)
    y = lax.reduce_window(y, -jnp.inf, lax.max, (1, 1, 1, 4), (1, 1, 1, 1), "VALID")

    feat = y.reshape(x.shape[0], -1)                     # (B, 25984)
    return jnp.dot(feat, lw.T, precision=hp) + lb


if __name__ == "__main__":
    key = jax.random.PRNGKey(0)
    kx, kp = jax.random.split(key)

    B = 2
    x = jax.random.normal(kx, (B, 1, H_IN, W_IN), jnp.float32)   # NCHW (2, 1, 2, 816)

    raw = init_raw_params(kp)
    kparams = fold_params(raw)

    out = jax.block_until_ready(cnn_forward(x, kparams))
    ref = jax.block_until_ready(reference_forward(x, raw))

    assert out.shape == (B, 2), out.shape
    # conv2 (and possibly conv1 / segment-sum passes) run through the MXU at bf16-pass
    # precision, so compare at 2e-2 rather than exact f32.
    if not bool(jnp.allclose(out, ref, atol=2e-2, rtol=2e-2)):
        raise AssertionError(f"mismatch: kernel={out} ref={ref}")
    print("KERNEL_OK")
</pallas_src>

<mosaic_0001>
module attributes {stable_mosaic.version = 11 : i64} {
  func.func @_cnn_kernel(%arg0: i32, %arg1: memref<8x896xf32, #tpu.memory_space<vmem>>, %arg2: memref<48x8xf32, #tpu.memory_space<vmem>>, %arg3: memref<48x1xf32, #tpu.memory_space<vmem>>, %arg4: memref<32x64xbf16, #tpu.memory_space<vmem>>, %arg5: memref<32x1xf32, #tpu.memory_space<vmem>>, %arg6: memref<2x32x896xf32, #tpu.memory_space<vmem>>, %arg7: memref<896x1xf32, #tpu.memory_space<vmem>>, %arg8: memref<1x2xf32, #tpu.memory_space<vmem>>, %arg9: memref<1x1x2xf32, #tpu.memory_space<vmem>>) attributes {dimension_semantics = [#tpu.dimension_semantics<parallel>], iteration_bounds = array<i64: 2>, scalar_prefetch = 0 : i64, scratch_operands = 0 : i64, tpu.core_type = #tpu.core_type<tc>, window_params = [{transform_indices = @transform_0, window_bounds = array<i64: 8, 896>}, {pipeline_mode = #tpu.pipeline_mode<synchronous>, transform_indices = @transform_1, window_bounds = array<i64: 48, 8>}, {pipeline_mode = #tpu.pipeline_mode<synchronous>, transform_indices = @transform_2, window_bounds = array<i64: 48, 1>}, {pipeline_mode = #tpu.pipeline_mode<synchronous>, transform_indices = @transform_3, window_bounds = array<i64: 32, 64>}, {pipeline_mode = #tpu.pipeline_mode<synchronous>, transform_indices = @transform_4, window_bounds = array<i64: 32, 1>}, {pipeline_mode = #tpu.pipeline_mode<synchronous>, transform_indices = @transform_5, window_bounds = array<i64: 2, 32, 896>}, {pipeline_mode = #tpu.pipeline_mode<synchronous>, transform_indices = @transform_6, window_bounds = array<i64: 896, 1>}, {pipeline_mode = #tpu.pipeline_mode<synchronous>, transform_indices = @transform_7, window_bounds = array<i64: 1, 2>}, {transform_indices = @transform_8, window_bounds = array<i64: 1, 1, 2>}]} {
    %c0 = arith.constant 0 : index
    %c0_0 = arith.constant 0 : index
    %0 = vector.load %arg1[%c0, %c0_0] : memref<8x896xf32, #tpu.memory_space<vmem>>, vector<8x896xf32>
    %c0_1 = arith.constant 0 : index
    %c0_2 = arith.constant 0 : index
    %1 = vector.load %arg2[%c0_1, %c0_2] : memref<48x8xf32, #tpu.memory_space<vmem>>, vector<48x8xf32>
    %cst = arith.constant dense<0.000000e+00> : vector<48x896xf32>
    %2 = tpu.matmul %1, %0, %cst {dimension_numbers = #tpu.dot_dimension_numbers<[1], [0], [0], [1], [0, 0, 1, 1], [], []>} : vector<48x8xf32>, vector<8x896xf32>, vector<48x896xf32> -> vector<48x896xf32>
    %c0_3 = arith.constant 0 : index
    %c0_4 = arith.constant 0 : index
    %3 = vector.load %arg3[%c0_3, %c0_4] : memref<48x1xf32, #tpu.memory_space<vmem>>, vector<48x1xf32>
    %4 = vector.broadcast %3 : vector<48x1xf32> to vector<48x896xf32>
    %5 = arith.addf %2, %4 : vector<48x896xf32>
    %cst_5 = arith.constant 0.000000e+00 : f32
    %6 = vector.broadcast %cst_5 : f32 to vector<48x896xf32>
    %7 = arith.maximumf %5, %6 : vector<48x896xf32>
    %8 = vector.extract_strided_slice %7 {offsets = [0, 0], sizes = [16, 896], strides = [1, 1]} : vector<48x896xf32> to vector<16x896xf32>
    %9 = vector.extract_strided_slice %7 {offsets = [16, 0], sizes = [16, 896], strides = [1, 1]} : vector<48x896xf32> to vector<16x896xf32>
    %10 = arith.maximumf %8, %9 : vector<16x896xf32>
    %11 = vector.extract_strided_slice %7 {offsets = [16, 0], sizes = [16, 896], strides = [1, 1]} : vector<48x896xf32> to vector<16x896xf32>
    %12 = vector.extract_strided_slice %7 {offsets = [32, 0], sizes = [16, 896], strides = [1, 1]} : vector<48x896xf32> to vector<16x896xf32>
    %13 = arith.maximumf %11, %12 : vector<16x896xf32>
    %c895_i32 = arith.constant 895 : i32
    %14 = tpu.dynamic_rotate %10 by %c895_i32 dim 1 : vector<16x896xf32>, i32 -> vector<16x896xf32>
    %15 = arith.maximumf %10, %14 : vector<16x896xf32>
    %c895_i32_6 = arith.constant 895 : i32
    %16 = tpu.dynamic_rotate %13 by %c895_i32_6 dim 1 : vector<16x896xf32>, i32 -> vector<16x896xf32>
    %17 = arith.maximumf %13, %16 : vector<16x896xf32>
    %c895_i32_7 = arith.constant 895 : i32
    %18 = tpu.dynamic_rotate %15 by %c895_i32_7 dim 1 : vector<16x896xf32>, i32 -> vector<16x896xf32>
    %c895_i32_8 = arith.constant 895 : i32
    %19 = tpu.dynamic_rotate %17 by %c895_i32_8 dim 1 : vector<16x896xf32>, i32 -> vector<16x896xf32>
    %20 = tpu.concatenate %15, %18, %17, %19 in 0 : vector<16x896xf32>, vector<16x896xf32>, vector<16x896xf32>, vector<16x896xf32> -> vector<64x896xf32>
    %21 = arith.truncf %20 : vector<64x896xf32> to vector<64x896xbf16>
    %c0_9 = arith.constant 0 : index
    %c0_10 = arith.constant 0 : index
    %22 = vector.load %arg4[%c0_9, %c0_10] : memref<32x64xbf16, #tpu.memory_space<vmem>>, vector<32x64xbf16>
    %cst_11 = arith.constant dense<0.000000e+00> : vector<32x896xf32>
    %23 = tpu.matmul %22, %21, %cst_11 {dimension_numbers = #tpu.dot_dimension_numbers<[1], [0], [0], [1], [0, 0, 1, 1], [], []>} : vector<32x64xbf16>, vector<64x896xbf16>, vector<32x896xf32> -> vector<32x896xf32>
    %c0_12 = arith.constant 0 : index
    %c0_13 = arith.constant 0 : index
    %24 = vector.load %arg5[%c0_12, %c0_13] : memref<32x1xf32, #tpu.memory_space<vmem>>, vector<32x1xf32>
    %25 = vector.broadcast %24 : vector<32x1xf32> to vector<32x896xf32>
    %26 = arith.addf %23, %25 : vector<32x896xf32>
    %cst_14 = arith.constant 0.000000e+00 : f32
    %27 = vector.broadcast %cst_14 : f32 to vector<32x896xf32>
    %28 = arith.maximumf %26, %27 : vector<32x896xf32>
    %c895_i32_15 = arith.constant 895 : i32
    %29 = tpu.dynamic_rotate %28 by %c895_i32_15 dim 1 : vector<32x896xf32>, i32 -> vector<32x896xf32>
    %30 = arith.maximumf %28, %29 : vector<32x896xf32>
    %c894_i32 = arith.constant 894 : i32
    %31 = tpu.dynamic_rotate %30 by %c894_i32 dim 1 : vector<32x896xf32>, i32 -> vector<32x896xf32>
    %32 = arith.maximumf %30, %31 : vector<32x896xf32>
    %c0_16 = arith.constant 0 : index
    %c0_17 = arith.constant 0 : index
    %33 = vector.load %arg7[%c0_16, %c0_17] : memref<896x1xf32, #tpu.memory_space<vmem>>, vector<896x1xf32>
    %c0_18 = arith.constant 0 : index
    %c0_19 = arith.constant 0 : index
    %c0_20 = arith.constant 0 : index
    %34 = vector.load %arg6[%c0_18, %c0_19, %c0_20] : memref<2x32x896xf32, #tpu.memory_space<vmem>>, vector<1x32x896xf32>
    %35 = vector.shape_cast %34 : vector<1x32x896xf32> to vector<32x896xf32>
    %36 = arith.mulf %35, %32 : vector<32x896xf32>
    %cst_21 = arith.constant dense<0.000000e+00> : vector<32x1xf32>
    %37 = tpu.matmul %36, %33, %cst_21 {dimension_numbers = #tpu.dot_dimension_numbers<[1], [0], [0], [1], [0, 0, 1, 1], [], []>} : vector<32x896xf32>, vector<896x1xf32>, vector<32x1xf32> -> vector<32x1xf32>
    %c1 = arith.constant 1 : index
    %c0_22 = arith.constant 0 : index
    %c0_23 = arith.constant 0 : index
    %38 = vector.load %arg6[%c1, %c0_22, %c0_23] : memref<2x32x896xf32, #tpu.memory_space<vmem>>, vector<1x32x896xf32>
    %39 = vector.shape_cast %38 : vector<1x32x896xf32> to vector<32x896xf32>
    %40 = arith.mulf %39, %32 : vector<32x896xf32>
    %cst_24 = arith.constant dense<0.000000e+00> : vector<32x1xf32>
    %41 = tpu.matmul %40, %33, %cst_24 {dimension_numbers = #tpu.dot_dimension_numbers<[1], [0], [0], [1], [0, 0, 1, 1], [], []>} : vector<32x896xf32>, vector<896x1xf32>, vector<32x1xf32> -> vector<32x1xf32>
    %cst_25 = arith.constant dense<0.000000e+00> : vector<1xf32>
    %42 = vector.multi_reduction <add>, %37, %cst_25 [0] : vector<32x1xf32> to vector<1xf32>
    %43 = vector.shape_cast %42 : vector<1xf32> to vector<1x1xf32>
    %cst_26 = arith.constant dense<0.000000e+00> : vector<1xf32>
    %44 = vector.multi_reduction <add>, %41, %cst_26 [0] : vector<32x1xf32> to vector<1xf32>
    %45 = vector.shape_cast %44 : vector<1xf32> to vector<1x1xf32>
    %46 = tpu.concatenate %43, %45 in 1 : vector<1x1xf32>, vector<1x1xf32> -> vector<1x2xf32>
    %c0_27 = arith.constant 0 : index
    %c0_28 = arith.constant 0 : index
    %47 = vector.load %arg8[%c0_27, %c0_28] : memref<1x2xf32, #tpu.memory_space<vmem>>, vector<1x2xf32>
    %48 = arith.addf %46, %47 : vector<1x2xf32>
    %c0_29 = arith.constant 0 : index
    %c0_30 = arith.constant 0 : index
    %c0_31 = arith.constant 0 : index
    %49 = vector.load %arg9[%c0_29, %c0_30, %c0_31] : memref<1x1x2xf32, #tpu.memory_space<vmem>>, vector<1x1x2xf32>
    %50 = vector.shape_cast %49 : vector<1x1x2xf32> to vector<1x2xf32>
    %51 = vector.shape_cast %48 : vector<1x2xf32> to vector<1x1x2xf32>
    tpu.vector_store %arg9[%c0_29, %c0_30, %c0_31], %51 {strides = array<i32>} : memref<1x1x2xf32, #tpu.memory_space<vmem>>, vector<1x1x2xf32>,
    return
  }
  func.func @transform_0(%arg0: i32) -> (i32, i32) {
    %c0_i32 = arith.constant 0 : i32
    %c0_i32_0 = arith.constant 0 : i32
    return %c0_i32, %arg0 : i32, i32
  }
  func.func @transform_1(%arg0: i32) -> (i32, i32) {
    %c0_i32 = arith.constant 0 : i32
    %c0_i32_0 = arith.constant 0 : i32
    %c0_i32_1 = arith.constant 0 : i32
    return %c0_i32, %c0_i32_0 : i32, i32
  }
  func.func @transform_2(%arg0: i32) -> (i32, i32) {
    %c0_i32 = arith.constant 0 : i32
    %c0_i32_0 = arith.constant 0 : i32
    %c0_i32_1 = arith.constant 0 : i32
    return %c0_i32, %c0_i32_0 : i32, i32
  }
  func.func @transform_3(%arg0: i32) -> (i32, i32) {
    %c0_i32 = arith.constant 0 : i32
    %c0_i32_0 = arith.constant 0 : i32
    %c0_i32_1 = arith.constant 0 : i32
    return %c0_i32, %c0_i32_0 : i32, i32
  }
  func.func @transform_4(%arg0: i32) -> (i32, i32) {
    %c0_i32 = arith.constant 0 : i32
    %c0_i32_0 = arith.constant 0 : i32
    %c0_i32_1 = arith.constant 0 : i32
    return %c0_i32, %c0_i32_0 : i32, i32
  }
  func.func @transform_5(%arg0: i32) -> (i32, i32, i32) {
    %c0_i32 = arith.constant 0 : i32
    %c0_i32_0 = arith.constant 0 : i32
    %c0_i32_1 = arith.constant 0 : i32
    %c0_i32_2 = arith.constant 0 : i32
    return %c0_i32, %c0_i32_0, %c0_i32_1 : i32, i32, i32
  }
  func.func @transform_6(%arg0: i32) -> (i32, i32) {
    %c0_i32 = arith.constant 0 : i32
    %c0_i32_0 = arith.constant 0 : i32
    %c0_i32_1 = arith.constant 0 : i32
    return %c0_i32, %c0_i32_0 : i32, i32
  }
  func.func @transform_7(%arg0: i32) -> (i32, i32) {
    %c0_i32 = arith.constant 0 : i32
    %c0_i32_0 = arith.constant 0 : i32
    %c0_i32_1 = arith.constant 0 : i32
    return %c0_i32, %c0_i32_0 : i32, i32
  }
  func.func @transform_8(%arg0: i32) -> (i32, i32, i32) {
    %c0_i32 = arith.constant 0 : i32
    %c0_i32_0 = arith.constant 0 : i32
    %c0_i32_1 = arith.constant 0 : i32
    return %arg0, %c0_i32, %c0_i32_0 : i32, i32, i32
  }
}

</mosaic_0001>

<llo_original>
// kernel: tpu_custom_call.1
$region0: #{tpu_custom_call.1}
  #allocation0 [shape = 'u32[]', space=smem, size = 0x4, offset = 0x4, fixed_abs, tag = 'smem constant byte address 0x4 - core index']
  #allocation1 [shape = 'u32[144,128]{1,0:T(1,128)}', space=vmem, size = 0x12000, scoped, tag = 'internal scratch']
  %s0 = inlined_call_operand.vmem [shape: f32[8,1792], index: 0, kind: input, shape index: {}]
  %s1 = inlined_call_operand.vmem [shape: f32[48,8], index: 1, kind: input, shape index: {}]
  %s2 = inlined_call_operand.vmem [shape: f32[48,1], index: 2, kind: input, shape index: {}]
  %s3 = inlined_call_operand.vmem [shape: bf16[32,64], index: 3, kind: input, shape index: {}]
  %s4 = inlined_call_operand.vmem [shape: f32[32,1], index: 4, kind: input, shape index: {}]
  %s5 = inlined_call_operand.vmem [shape: f32[2,32,896], index: 5, kind: input, shape index: {}]
  %s6 = inlined_call_operand.vmem [shape: f32[896,1], index: 6, kind: input, shape index: {}]
  %s7 = inlined_call_operand.vmem [shape: f32[1,2], index: 7, kind: input, shape index: {}]
  %s8 = inlined_call_operand.hbm [shape: f32[2,1,2], index: 8, kind: output, shape index: {}]
  %s9 = sld [smem:[#allocation0]]
  $region65: #{tpu_custom_call.1} parent=0
    _
  %s11 = ssub.s32 1, %s9
  %s12 = scalar_select 0, %s11, %s9
  $region1: #{tpu_custom_call.1} parent=0
    #allocation2 [shape = 'u8[1024]{0}', space=vmem, size = 0x400, scoped, tag = 'output window, operand 0']
    #allocation3 [shape = 's32[2]{0}', space=sflag, size = 0x8, scoped, tag = 'scoped memory for tpu_custom_call.1']
    %13 = vsyncpa [#allocation3], 0
    %s14 = scalar_lea.sflag [#allocation3], 1
    %15 = vsyncpa %s14, 0
    loop: start=0, step=1, limit=4
    $region2: #{tpu_custom_call.1} parent=1 // loop_pre_header
      _
    $region3: #{tpu_custom_call.1} parent=1 // loop_header
      %s17 = sphi 0, %s21
      %p18 = scmp.ge.s32.totalorder %s17, 4
      %s27 = sphi 0, %s29
      %s30 = sphi 0, %s27
      %s31 = sphi 0, %s30
      %s47 = sphi 0, %s31
      %s51 = sphi 0, %s51
      %s53 = sphi 0, %s51
      %s54 = sphi 0, %s53
      %s68 = sphi 0, %s54
      %s72 = sphi 0, %s72
      %s74 = sphi 0, %s72
      %s75 = sphi 0, %s74
      %s89 = sphi 0, %s75
      %s93 = sphi 0, %s93
      %s95 = sphi 0, %s93
      %s96 = sphi 0, %s95
      %s110 = sphi 0, %s96
      %s114 = sphi 0, %s114
      %s116 = sphi 0, %s114
      %s117 = sphi 0, %s116
      %s131 = sphi 0, %s117
      %s135 = sphi 0, %s135
      %s137 = sphi 0, %s135
      %s138 = sphi 0, %s137
      %s152 = sphi 0, %s138
      %s156 = sphi 0, %s156
      %s158 = sphi 0, %s156
      %s159 = sphi 0, %s158
      %s173 = sphi 0, %s159
      %s177 = sphi 0, %s177
      %s179 = sphi 0, %s177
      %s180 = sphi 0, %s179
      %s194 = sphi 0, %s180
      %s200 = sphi 0, %s202
      %s203 = sphi 0, %s200
      %s204 = sphi 0, %s203
      %s220 = sphi 0, %s204
    $region4: #{tpu_custom_call.1} parent=1 // loop_header_branch
      %20 = sbr.rel (%p18) target = $region8
    $region5: #{tpu_custom_call.1} parent=1 // loop_body
      %s22 = ssub.s32 %s17, 1
      %s23 = ssub.s32 %s17, 2
      %s24 = sadd.s32 %s17, 1
      %s25 = ssub.s32 %s17, %s24
      %p26 = scmp.eq.s32.totalorder %s25, 0
      %s28 = sadd.s32 %s27, 1
      %s29 = scalar_select %p26, %s27, %s28
      %p32 = pneg %p26
      %p33 = scmp.eq.s32.totalorder %s17, 1
      %p34 = por %p32, %p33
      %p35 = scmp.ne.s32.totalorder %s27, %s30
      %p36 = scmp.eq.s32.totalorder %s17, 0
      %p37 = por %p35, %p36
      %p38 = scmp.ne.s32.totalorder %s27, %s30
      %p39 = scmp.eq.s32.totalorder %s22, 1
      %p40 = por %p38, %p39
      %p41 = scmp.ne.s32.totalorder %s30, %s31
      %p42 = scmp.eq.s32.totalorder %s22, 0
      %p43 = por %p41, %p42
      %p44 = scmp.ne.s32.totalorder %s30, %s31
      %p45 = scmp.eq.s32.totalorder %s23, 1
      %p46 = por %p44, %p45
      %p48 = scmp.ne.s32.totalorder %s31, %s47
      %p49 = scmp.eq.s32.totalorder %s23, 0
      %p50 = por %p48, %p49
      %s52 = sadd.s32 %s51, 1
      %p55 = scmp.eq.s32.totalorder %s17, 1
      %p56 = scmp.ne.s32.totalorder %s51, %s53
      %p57 = scmp.eq.s32.totalorder %s17, 0
      %p58 = por %p56, %p57
      %p59 = scmp.ne.s32.totalorder %s51, %s53
      %p60 = scmp.eq.s32.totalorder %s22, 1
      %p61 = por %p59, %p60
      %p62 = scmp.ne.s32.totalorder %s53, %s54
      %p63 = scmp.eq.s32.totalorder %s22, 0
      %p64 = por %p62, %p63
      %p65 = scmp.ne.s32.totalorder %s53, %s54
      %p66 = scmp.eq.s32.totalorder %s23, 1
      %p67 = por %p65, %p66
      %p69 = scmp.ne.s32.totalorder %s54, %s68
      %p70 = scmp.eq.s32.totalorder %s23, 0
      %p71 = por %p69, %p70
      %s73 = sadd.s32 %s72, 1
      %p76 = scmp.eq.s32.totalorder %s17, 1
      %p77 = scmp.ne.s32.totalorder %s72, %s74
      %p78 = scmp.eq.s32.totalorder %s17, 0
      %p79 = por %p77, %p78
      %p80 = scmp.ne.s32.totalorder %s72, %s74
      %p81 = scmp.eq.s32.totalorder %s22, 1
      %p82 = por %p80, %p81
      %p83 = scmp.ne.s32.totalorder %s74, %s75
      %p84 = scmp.eq.s32.totalorder %s22, 0
      %p85 = por %p83, %p84
      %p86 = scmp.ne.s32.totalorder %s74, %s75
      %p87 = scmp.eq.s32.totalorder %s23, 1
      %p88 = por %p86, %p87
      %p90 = scmp.ne.s32.totalorder %s75, %s89
      %p91 = scmp.eq.s32.totalorder %s23, 0
      %p92 = por %p90, %p91
      %s94 = sadd.s32 %s93, 1
      %p97 = scmp.eq.s32.totalorder %s17, 1
      %p98 = scmp.ne.s32.totalorder %s93, %s95
      %p99 = scmp.eq.s32.totalorder %s17, 0
      %p100 = por %p98, %p99
      %p101 = scmp.ne.s32.totalorder %s93, %s95
      %p102 = scmp.eq.s32.totalorder %s22, 1
      %p103 = por %p101, %p102
      %p104 = scmp.ne.s32.totalorder %s95, %s96
      %p105 = scmp.eq.s32.totalorder %s22, 0
      %p106 = por %p104, %p105
      %p107 = scmp.ne.s32.totalorder %s95, %s96
      %p108 = scmp.eq.s32.totalorder %s23, 1
      %p109 = por %p107, %p108
      %p111 = scmp.ne.s32.totalorder %s96, %s110
      %p112 = scmp.eq.s32.totalorder %s23, 0
      %p113 = por %p111, %p112
      %s115 = sadd.s32 %s114, 1
      %p118 = scmp.eq.s32.totalorder %s17, 1
      %p119 = scmp.ne.s32.totalorder %s114, %s116
      %p120 = scmp.eq.s32.totalorder %s17, 0
      %p121 = por %p119, %p120
      %p122 = scmp.ne.s32.totalorder %s114, %s116
      %p123 = scmp.eq.s32.totalorder %s22, 1
      %p124 = por %p122, %p123
      %p125 = scmp.ne.s32.totalorder %s116, %s117
      %p126 = scmp.eq.s32.totalorder %s22, 0
      %p127 = por %p125, %p126
      %p128 = scmp.ne.s32.totalorder %s116, %s117
      %p129 = scmp.eq.s32.totalorder %s23, 1
      %p130 = por %p128, %p129
      %p132 = scmp.ne.s32.totalorder %s117, %s131
      %p133 = scmp.eq.s32.totalorder %s23, 0
      %p134 = por %p132, %p133
      %s136 = sadd.s32 %s135, 1
      %p139 = scmp.eq.s32.totalorder %s17, 1
      %p140 = scmp.ne.s32.totalorder %s135, %s137
      %p141 = scmp.eq.s32.totalorder %s17, 0
      %p142 = por %p140, %p141
      %p143 = scmp.ne.s32.totalorder %s135, %s137
      %p144 = scmp.eq.s32.totalorder %s22, 1
      %p145 = por %p143, %p144
      %p146 = scmp.ne.s32.totalorder %s137, %s138
      %p147 = scmp.eq.s32.totalorder %s22, 0
      %p148 = por %p146, %p147
      %p149 = scmp.ne.s32.totalorder %s137, %s138
      %p150 = scmp.eq.s32.totalorder %s23, 1
      %p151 = por %p149, %p150
      %p153 = scmp.ne.s32.totalorder %s138, %s152
      %p154 = scmp.eq.s32.totalorder %s23, 0
      %p155 = por %p153, %p154
      %s157 = sadd.s32 %s156, 1
      %p160 = scmp.eq.s32.totalorder %s17, 1
      %p161 = scmp.ne.s32.totalorder %s156, %s158
      %p162 = scmp.eq.s32.totalorder %s17, 0
      %p163 = por %p161, %p162
      %p164 = scmp.ne.s32.totalorder %s156, %s158
      %p165 = scmp.eq.s32.totalorder %s22, 1
      %p166 = por %p164, %p165
      %p167 = scmp.ne.s32.totalorder %s158, %s159
      %p168 = scmp.eq.s32.totalorder %s22, 0
      %p169 = por %p167, %p168
      %p170 = scmp.ne.s32.totalorder %s158, %s159
      %p171 = scmp.eq.s32.totalorder %s23, 1
      %p172 = por %p170, %p171
      %p174 = scmp.ne.s32.totalorder %s159, %s173
      %p175 = scmp.eq.s32.totalorder %s23, 0
      %p176 = por %p174, %p175
      %s178 = sadd.s32 %s177, 1
      %p181 = scmp.eq.s32.totalorder %s17, 1
      %p182 = scmp.ne.s32.totalorder %s177, %s179
      %p183 = scmp.eq.s32.totalorder %s17, 0
      %p184 = por %p182, %p183
      %p185 = scmp.ne.s32.totalorder %s177, %s179
      %p186 = scmp.eq.s32.totalorder %s22, 1
      %p187 = por %p185, %p186
      %p188 = scmp.ne.s32.totalorder %s179, %s180
      %p189 = scmp.eq.s32.totalorder %s22, 0
      %p190 = por %p188, %p189
      %p191 = scmp.ne.s32.totalorder %s179, %s180
      %p192 = scmp.eq.s32.totalorder %s23, 1
      %p193 = por %p191, %p192
      %p195 = scmp.ne.s32.totalorder %s180, %s194
      %p196 = scmp.eq.s32.totalorder %s23, 0
      %p197 = por %p195, %p196
      %s198 = ssub.s32 %s17, %s24
      %p199 = scmp.eq.s32.totalorder %s198, 0
      %s201 = sadd.s32 %s200, 1
      %s202 = scalar_select %p199, %s200, %s201
      %p205 = pneg %p199
      %p206 = scmp.eq.s32.totalorder %s17, 1
      %p207 = por %p205, %p206
      %p208 = scmp.ne.s32.totalorder %s200, %s203
      %p209 = scmp.eq.s32.totalorder %s17, 0
      %p210 = por %p208, %p209
      %p211 = scmp.ne.s32.totalorder %s200, %s203
      %p212 = scmp.eq.s32.totalorder %s22, 1
      %p213 = por %p211, %p212
      %p214 = scmp.ne.s32.totalorder %s203, %s204
      %p215 = scmp.eq.s32.totalorder %s22, 0
      %p216 = por %p214, %p215
      %p217 = scmp.ne.s32.totalorder %s203, %s204
      %p218 = scmp.eq.s32.totalorder %s23, 1
      %p219 = por %p217, %p218
      %p221 = scmp.ne.s32.totalorder %s204, %s220
      %p222 = scmp.eq.s32.totalorder %s23, 0
      %p223 = por %p221, %p222
      %p224 = scmp.le.s32.totalorder 1, %s17
      %p225 = scmp.lt.s32.totalorder %s17, 3
      %p226 = pnand %p224, %p225
      %p227 = pneg %p226
      // Predicated region
      $region9: #{tpu_custom_call.1} parent=5 // pred_check
        _
      $region10: #{tpu_custom_call.1} parent=5 // pred_check_branch
        %229 = sbr.rel (%p226) target = $region12
      $region11: #{tpu_custom_call.1} parent=5 // pred_region
        %s230 = ssub.s32 %s17, 1
        // Predicated region
        $region13: #{tpu_custom_call.1} parent=11 // pred_check
          %p231 = pneg %p64
        $region14: #{tpu_custom_call.1} parent=11 // pred_check_branch
          %233 = sbr.rel (%p231) target = $region16
        $region15: #{tpu_custom_call.1} parent=11 // pred_region
          _
        $region16: #{tpu_custom_call.1} parent=11 // pred_fallthru
          _
        // Predicated region
        $region17: #{tpu_custom_call.1} parent=11 // pred_check
          %p234 = pneg %p85
        $region18: #{tpu_custom_call.1} parent=11 // pred_check_branch
          %236 = sbr.rel (%p234) target = $region20
        $region19: #{tpu_custom_call.1} parent=11 // pred_region
          _
        $region20: #{tpu_custom_call.1} parent=11 // pred_fallthru
          _
        // Predicated region
        $region21: #{tpu_custom_call.1} parent=11 // pred_check
          %p237 = pneg %p106
        $region22: #{tpu_custom_call.1} parent=11 // pred_check_branch
          %239 = sbr.rel (%p237) target = $region24
        $region23: #{tpu_custom_call.1} parent=11 // pred_region
          _
        $region24: #{tpu_custom_call.1} parent=11 // pred_fallthru
          _
        // Predicated region
        $region25: #{tpu_custom_call.1} parent=11 // pred_check
          %p240 = pneg %p127
        $region26: #{tpu_custom_call.1} parent=11 // pred_check_branch
          %242 = sbr.rel (%p240) target = $region28
        $region27: #{tpu_custom_call.1} parent=11 // pred_region
          _
        $region28: #{tpu_custom_call.1} parent=11 // pred_fallthru
          _
        // Predicated region
        $region29: #{tpu_custom_call.1} parent=11 // pred_check
          %p243 = pneg %p148
        $region30: #{tpu_custom_call.1} parent=11 // pred_check_branch
          %245 = sbr.rel (%p243) target = $region32
        $region31: #{tpu_custom_call.1} parent=11 // pred_region
          _
        $region32: #{tpu_custom_call.1} parent=11 // pred_fallthru
          _
        // Predicated region
        $region33: #{tpu_custom_call.1} parent=11 // pred_check
          %p246 = pneg %p169
        $region34: #{tpu_custom_call.1} parent=11 // pred_check_branch
          %248 = sbr.rel (%p246) target = $region36
        $region35: #{tpu_custom_call.1} parent=11 // pred_region
          _
        $region36: #{tpu_custom_call.1} parent=11 // pred_fallthru
          _
        // Predicated region
        $region37: #{tpu_custom_call.1} parent=11 // pred_check
          %p249 = pneg %p190
        $region38: #{tpu_custom_call.1} parent=11 // pred_check_branch
          %251 = sbr.rel (%p249) target = $region40
        $region39: #{tpu_custom_call.1} parent=11 // pred_region
          _
        $region40: #{tpu_custom_call.1} parent=11 // pred_fallthru
          _
      $region12: #{tpu_custom_call.1} parent=5 // pred_fallthru
        _
      %p252 = scmp.lt.s32.totalorder %s17, 2
      // Predicated region
      $region41: #{tpu_custom_call.1} parent=5 // pred_check
        %p253 = pneg %p252
      $region42: #{tpu_custom_call.1} parent=5 // pred_check_branch
        %255 = sbr.rel (%p253) target = $region44
      $region43: #{tpu_custom_call.1} parent=5 // pred_region
        // Predicated region
        $region45: #{tpu_custom_call.1} parent=43 // pred_check
          %p256 = pneg %p37
        $region46: #{tpu_custom_call.1} parent=43 // pred_check_branch
          %258 = sbr.rel (%p256) target = $region48
        $region47: #{tpu_custom_call.1} parent=43 // pred_region
          %s259 = smul.u32 7, %s17
          %p260 = scmp.lt.s32.totalorder %s259, 13
          %s261 = scalar_select %p260, %s259, 13
          %s262 = smul.addr %s261, 8
          %s263 = scalar_lea.vmem %s0, %s262
          %s264 = smul.u32 7, %s17
        $region48: #{tpu_custom_call.1} parent=43 // pred_fallthru
          _
      $region44: #{tpu_custom_call.1} parent=5 // pred_fallthru
        _
      %p265 = scmp.le.s32.totalorder 1, %s17
      %p266 = scmp.lt.s32.totalorder %s17, 3
      %p267 = pnand %p265, %p266
      %p268 = pneg %p267
      // Predicated region
      $region49: #{tpu_custom_call.1} parent=5 // pred_check
        _
      $region50: #{tpu_custom_call.1} parent=5 // pred_check_branch
        %270 = sbr.rel (%p267) target = $region52
      $region51: #{tpu_custom_call.1} parent=5 // pred_region
        %s271 = ssub.s32 %s17, 1
        %s272 = smul.u32 7, %s22
        %p273 = scmp.lt.s32.totalorder %s272, 13
        %s274 = scalar_select %p273, %s272, 13
        %s275 = smul.addr %s274, 8
        %s276 = scalar_lea.vmem %s0, %s275
        %p277 = pneg %p43
        %p278 = pneg %p40
        %p279 = pneg %p64
        %p280 = pneg %p61
        %p281 = pneg %p85
        %p282 = pneg %p82
        %p283 = pneg %p106
        %p284 = pneg %p103
        %p285 = pneg %p127
        %p286 = pneg %p124
        %p287 = pneg %p148
        %p288 = pneg %p145
        %p289 = pneg %p169
        %p290 = pneg %p166
        %p291 = pneg %p190
        %p292 = pneg %p187
        %p293 = pneg %p216
        %p294 = pneg %p213
        %s295 = sand.u32 %s203, 1
        %s296 = scalar_lea.sflag [#allocation3], %s295
        %s297 = sand.u32 %s203, 1
        %s298 = scalar_lea.vmem [#allocation2], %s297
        %s299 = smul.u32 7, %s22
        %p300 = scmp.lt.s32.totalorder %s299, 13
        %s301 = scalar_select %p300, %s299, 13
        %s302 = smul.addr %s301, 8
        %s303 = scalar_lea.vmem %s0, %s302
        %s304 = smul.u32 7, %s22
        %v306 = vld [vmem:[%s303] sm:$0xff]
        %v307 = vld [vmem:[%s303 + $0x8] sm:$0xff]
        %v308 = vld [vmem:[%s303 + $0x10] sm:$0xff]
        %v309 = vld [vmem:[%s303 + $0x18] sm:$0xff]
        %v310 = vld [vmem:[%s303 + $0x20] sm:$0xff]
        %v311 = vld [vmem:[%s303 + $0x28] sm:$0xff]
        %v312 = vld [vmem:[%s303 + $0x30] sm:$0xff]
        %v313 = vld [vmem:[%s1] sm:$0xff]
        %v314 = vld [vmem:[%s1 + $0x8] sm:$0xff]
        %v315 = vld [vmem:[%s1 + $0x10] sm:$0xff]
        %v316 = vld [vmem:[%s1 + $0x18] sm:$0xff]
        %v317 = vld [vmem:[%s1 + $0x20] sm:$0xff]
        %v318 = vld [vmem:[%s1 + $0x28] sm:$0xff]
        %v319 = vld [vmem:[%s2] sm:$0xff]
        %v320 = vld [vmem:[%s2 + $0x8] sm:$0xff]
        %v321 = vld [vmem:[%s2 + $0x10] sm:$0xff]
        %v322 = vld [vmem:[%s2 + $0x18] sm:$0xff]
        %v323 = vld [vmem:[%s2 + $0x20] sm:$0xff]
        %v324 = vld [vmem:[%s2 + $0x28] sm:$0xff]
        %326 = vset.pattern.permute.xlu0 0
        %327 = vperm.xlu0 %326, %v319
        %v328 = vpop.permute.xlu0 %327
        %331 = vset.pattern.permute.xlu0 0
        %332 = vperm.xlu0 %331, %v320
        %v333 = vpop.permute.xlu0 %332
        %336 = vset.pattern.permute.xlu0 0
        %337 = vperm.xlu0 %336, %v321
        %v338 = vpop.permute.xlu0 %337
        %341 = vset.pattern.permute.xlu0 0
        %342 = vperm.xlu0 %341, %v322
        %v343 = vpop.permute.xlu0 %342
        %346 = vset.pattern.permute.xlu0 0
        %347 = vperm.xlu0 %346, %v323
        %v348 = vpop.permute.xlu0 %347
        %351 = vset.pattern.permute.xlu0 0
        %352 = vperm.xlu0 %351, %v324
        %v353 = vpop.permute.xlu0 %352
        %vm355 = vcmask 64512
        %v357 = vsel %vm355, %v313, 0
        %v360 = vsel %vm355, %v314, 0
        %v363 = vsel %vm355, %v315, 0
        %v366 = vsel %vm355, %v316, 0
        %v369 = vsel %vm355, %v317, 0
        %v372 = vsel %vm355, %v318, 0
        %374 = vmatprep.subr.mxu0 %v307
        %375 = vmatpush1.msra.mxu0 %v306
        %376 = vmatprep.subr.mxu0 0.0
        %377 = vmatpush1.msra.mxu0 0.0
        %378 = vmatprep.subr.mxu0 0.0
        %379 = vmatpush1.msra.mxu0 0.0
        %380 = vmatprep.subr.mxu0 0.0
        %381 = vmatpush1.msra.mxu0 0.0
        %382 = vmatprep.subr.mxu0 0.0
        %383 = vmatpush1.msra.mxu0 0.0
        %384 = vmatprep.subr.mxu0 0.0
        %385 = vmatpush1.msra.mxu0 0.0
        %386 = vmatprep.subr.mxu0 0.0
        %387 = vmatpush1.msra.mxu0 0.0
        %388 = vmatprep.subr.mxu0 0.0
        %389 = vmatpush1.msra.mxu0 0.0
        %390 = vmatprep.subr.mxu0 0.0
        %391 = vmatpush1.msra.mxu0 0.0
        %392 = vmatprep.subr.mxu0 0.0
        %393 = vmatpush1.msra.mxu0 0.0
        %394 = vmatprep.subr.mxu0 0.0
        %395 = vmatpush1.msra.mxu0 0.0
        %396 = vmatprep.subr.mxu0 0.0
        %397 = vmatpush1.msra.mxu0 0.0
        %398 = vmatprep.subr.mxu0 0.0
        %399 = vmatpush1.msra.mxu0 0.0
        %400 = vmatprep.subr.mxu0 0.0
        %401 = vmatpush1.msra.mxu0 0.0
        %402 = vmatprep.subr.mxu0 0.0
        %403 = vmatpush1.msra.mxu0 0.0
        %404 = vmatprep.subr.mxu0 0.0
        %405 = vmatpush1.msra.mxu0 0.0
        %406 = vmatprep.subr.mxu0 0.0
        %407 = vmatpush1.msra.mxu0 0.0
        %408 = vmatprep.subr.mxu0 0.0
        %409 = vmatpush1.msra.mxu0 0.0
        %410 = vmatprep.subr.mxu0 0.0
        %411 = vmatpush1.msra.mxu0 0.0
        %412 = vmatprep.subr.mxu0 0.0
        %413 = vmatpush1.msra.mxu0 0.0
        %414 = vmatprep.subr.mxu0 0.0
        %415 = vmatpush1.msra.mxu0 0.0
        %416 = vmatprep.subr.mxu0 0.0
        %417 = vmatpush1.msra.mxu0 0.0
        %418 = vmatprep.subr.mxu0 0.0
        %419 = vmatpush1.msra.mxu0 0.0
        %420 = vmatprep.subr.mxu0 0.0
        %421 = vmatpush1.msra.mxu0 0.0
        %422 = vmatprep.subr.mxu0 0.0
        %423 = vmatpush1.msra.mxu0 0.0
        %424 = vmatprep.subr.mxu0 0.0
        %425 = vmatpush1.msra.mxu0 0.0
        %426 = vmatprep.subr.mxu0 0.0
        %427 = vmatpush1.msra.mxu0 0.0
        %428 = vmatprep.subr.mxu0 0.0
        %429 = vmatpush1.msra.mxu0 0.0
        %430 = vmatprep.subr.mxu0 0.0
        %431 = vmatpush1.msra.mxu0 0.0
        %432 = vmatprep.subr.mxu0 0.0
        %433 = vmatpush1.msra.mxu0 0.0
        %434 = vmatprep.subr.mxu0 0.0
        %435 = vmatpush1.msra.mxu0 0.0
        %436 = vmatprep.subr.mxu0 0.0
        %437 = vmatpush1.msra.mxu0 0.0
        %438 = vmatprep.mubr.f32.mxu0 0.0
        %439 = vmatmul.mubr.f32.gmra.mrb[0].mxu0 %v357
        %v440 = vpop.f32.mrb[0].mxu0
        %v441 = vadd.f32 %v328, %v440
        %v442 = vpop.f32.mrb[0].mxu0
        %v443 = vadd.f32 %v328, %v442
        %444 = vmatprep.mubr.f32.mxu0 0.0
        %445 = vmatmul.mubr.f32.gmra.mrb[0].mxu0 %v360
        %v446 = vpop.f32.mrb[0].mxu0
        %v447 = vadd.f32 %v333, %v446
        %v448 = vpop.f32.mrb[0].mxu0
        %v449 = vadd.f32 %v333, %v448
        %450 = vmatprep.mubr.f32.mxu0 0.0
        %451 = vmatmul.mubr.f32.gmra.mrb[0].mxu0 %v363
        %v452 = vpop.f32.mrb[0].mxu0
        %v453 = vadd.f32 %v338, %v452
        %v454 = vpop.f32.mrb[0].mxu0
        %v455 = vadd.f32 %v338, %v454
        %456 = vmatprep.mubr.f32.mxu0 0.0
        %457 = vmatmul.mubr.f32.gmra.mrb[0].mxu0 %v366
        %v458 = vpop.f32.mrb[0].mxu0
        %v459 = vadd.f32 %v343, %v458
        %v460 = vpop.f32.mrb[0].mxu0
        %v461 = vadd.f32 %v343, %v460
        %462 = vmatprep.mubr.f32.mxu0 0.0
        %463 = vmatmul.mubr.f32.gmra.mrb[0].mxu0 %v369
        %v464 = vpop.f32.mrb[0].mxu0
        %v465 = vadd.f32 %v348, %v464
        %v466 = vpop.f32.mrb[0].mxu0
        %v467 = vadd.f32 %v348, %v466
        %468 = vmatprep.mubr.f32.mxu0 0.0
        %469 = vmatmul.mubr.f32.gmra.mrb[0].mxu0 %v372
        %v470 = vpop.f32.mrb[0].mxu0
        %v471 = vadd.f32 %v353, %v470
        %v472 = vpop.f32.mrb[0].mxu0
        %v473 = vadd.f32 %v353, %v472
        %474 = vdwg.mxu0
        %475 = vmatprep.subr.mxu0 %v309
        %476 = vmatpush1.msra.mxu0 %v308
        %477 = vmatprep.subr.mxu0 0.0
        %478 = vmatpush1.msra.mxu0 0.0
        %479 = vmatprep.subr.mxu0 0.0
        %480 = vmatpush1.msra.mxu0 0.0
        %481 = vmatprep.subr.mxu0 0.0
        %482 = vmatpush1.msra.mxu0 0.0
        %483 = vmatprep.subr.mxu0 0.0
        %484 = vmatpush1.msra.mxu0 0.0
        %485 = vmatprep.subr.mxu0 0.0
        %486 = vmatpush1.msra.mxu0 0.0
        %487 = vmatprep.subr.mxu0 0.0
        %488 = vmatpush1.msra.mxu0 0.0
        %489 = vmatprep.subr.mxu0 0.0
        %490 = vmatpush1.msra.mxu0 0.0
        %491 = vmatprep.subr.mxu0 0.0
        %492 = vmatpush1.msra.mxu0 0.0
        %493 = vmatprep.subr.mxu0 0.0
        %494 = vmatpush1.msra.mxu0 0.0
        %495 = vmatprep.subr.mxu0 0.0
        %496 = vmatpush1.msra.mxu0 0.0
        %497 = vmatprep.subr.mxu0 0.0
        %498 = vmatpush1.msra.mxu0 0.0
        %499 = vmatprep.subr.mxu0 0.0
        %500 = vmatpush1.msra.mxu0 0.0
        %501 = vmatprep.subr.mxu0 0.0
        %502 = vmatpush1.msra.mxu0 0.0
        %503 = vmatprep.subr.mxu0 0.0
        %504 = vmatpush1.msra.mxu0 0.0
        %505 = vmatprep.subr.mxu0 0.0
        %506 = vmatpush1.msra.mxu0 0.0
        %507 = vmatprep.subr.mxu0 0.0
        %508 = vmatpush1.msra.mxu0 0.0
        %509 = vmatprep.subr.mxu0 0.0
        %510 = vmatpush1.msra.mxu0 0.0
        %511 = vmatprep.subr.mxu0 0.0
        %512 = vmatpush1.msra.mxu0 0.0
        %513 = vmatprep.subr.mxu0 0.0
        %514 = vmatpush1.msra.mxu0 0.0
        %515 = vmatprep.subr.mxu0 0.0
        %516 = vmatpush1.msra.mxu0 0.0
        %517 = vmatprep.subr.mxu0 0.0
        %518 = vmatpush1.msra.mxu0 0.0
        %519 = vmatprep.subr.mxu0 0.0
        %520 = vmatpush1.msra.mxu0 0.0
        %521 = vmatprep.subr.mxu0 0.0
        %522 = vmatpush1.msra.mxu0 0.0
        %523 = vmatprep.subr.mxu0 0.0
        %524 = vmatpush1.msra.mxu0 0.0
        %525 = vmatprep.subr.mxu0 0.0
        %526 = vmatpush1.msra.mxu0 0.0
        %527 = vmatprep.subr.mxu0 0.0
        %528 = vmatpush1.msra.mxu0 0.0
        %529 = vmatprep.subr.mxu0 0.0
        %530 = vmatpush1.msra.mxu0 0.0
        %531 = vmatprep.subr.mxu0 0.0
        %532 = vmatpush1.msra.mxu0 0.0
        %533 = vmatprep.subr.mxu0 0.0
        %534 = vmatpush1.msra.mxu0 0.0
        %535 = vmatprep.subr.mxu0 0.0
        %536 = vmatpush1.msra.mxu0 0.0
        %537 = vmatprep.subr.mxu0 0.0
        %538 = vmatpush1.msra.mxu0 0.0
        %539 = vmatprep.mubr.f32.mxu0 0.0
        %540 = vmatmul.mubr.f32.gmra.mrb[0].mxu0 %v357
        %v541 = vpop.f32.mrb[0].mxu0
        %v542 = vadd.f32 %v328, %v541
        %v543 = vpop.f32.mrb[0].mxu0
        %v544 = vadd.f32 %v328, %v543
        %545 = vmatprep.mubr.f32.mxu0 0.0
        %546 = vmatmul.mubr.f32.gmra.mrb[0].mxu0 %v360
        %v547 = vpop.f32.mrb[0].mxu0
        %v548 = vadd.f32 %v333, %v547
        %v549 = vpop.f32.mrb[0].mxu0
        %v550 = vadd.f32 %v333, %v549
        %551 = vmatprep.mubr.f32.mxu0 0.0
        %552 = vmatmul.mubr.f32.gmra.mrb[0].mxu0 %v363
        %v553 = vpop.f32.mrb[0].mxu0
        %v554 = vadd.f32 %v338, %v553
        %v555 = vpop.f32.mrb[0].mxu0
        %v556 = vadd.f32 %v338, %v555
        %557 = vmatprep.mubr.f32.mxu0 0.0
        %558 = vmatmul.mubr.f32.gmra.mrb[0].mxu0 %v366
        %v559 = vpop.f32.mrb[0].mxu0
        %v560 = vadd.f32 %v343, %v559
        %v561 = vpop.f32.mrb[0].mxu0
        %v562 = vadd.f32 %v343, %v561
        %563 = vmatprep.mubr.f32.mxu0 0.0
        %564 = vmatmul.mubr.f32.gmra.mrb[0].mxu0 %v369
        %v565 = vpop.f32.mrb[0].mxu0
        %v566 = vadd.f32 %v348, %v565
        %v567 = vpop.f32.mrb[0].mxu0
        %v568 = vadd.f32 %v348, %v567
        %569 = vmatprep.mubr.f32.mxu0 0.0
        %570 = vmatmul.mubr.f32.gmra.mrb[0].mxu0 %v372
        %v571 = vpop.f32.mrb[0].mxu0
        %v572 = vadd.f32 %v353, %v571
        %v573 = vpop.f32.mrb[0].mxu0
        %v574 = vadd.f32 %v353, %v573
        %575 = vdwg.mxu0
        %576 = vmatprep.subr.mxu0 %v311
        %577 = vmatpush1.msra.mxu0 %v310
        %578 = vmatprep.subr.mxu0 0.0
        %579 = vmatpush1.msra.mxu0 0.0
        %580 = vmatprep.subr.mxu0 0.0
        %581 = vmatpush1.msra.mxu0 0.0
        %582 = vmatprep.subr.mxu0 0.0
        %583 = vmatpush1.msra.mxu0 0.0
        %584 = vmatprep.subr.mxu0 0.0
        %585 = vmatpush1.msra.mxu0 0.0
        %586 = vmatprep.subr.mxu0 0.0
        %587 = vmatpush1.msra.mxu0 0.0
        %588 = vmatprep.subr.mxu0 0.0
        %589 = vmatpush1.msra.mxu0 0.0
        %590 = vmatprep.subr.mxu0 0.0
        %591 = vmatpush1.msra.mxu0 0.0
        %592 = vmatprep.subr.mxu0 0.0
        %593 = vmatpush1.msra.mxu0 0.0
        %594 = vmatprep.subr.mxu0 0.0
        %595 = vmatpush1.msra.mxu0 0.0
        %596 = vmatprep.subr.mxu0 0.0
        %597 = vmatpush1.msra.mxu0 0.0
        %598 = vmatprep.subr.mxu0 0.0
        %599 = vmatpush1.msra.mxu0 0.0
        %600 = vmatprep.subr.mxu0 0.0
        %601 = vmatpush1.msra.mxu0 0.0
        %602 = vmatprep.subr.mxu0 0.0
        %603 = vmatpush1.msra.mxu0 0.0
        %604 = vmatprep.subr.mxu0 0.0
        %605 = vmatpush1.msra.mxu0 0.0
        %606 = vmatprep.subr.mxu0 0.0
        %607 = vmatpush1.msra.mxu0 0.0
        %608 = vmatprep.subr.mxu0 0.0
        %609 = vmatpush1.msra.mxu0 0.0
        %610 = vmatprep.subr.mxu0 0.0
        %611 = vmatpush1.msra.mxu0 0.0
        %612 = vmatprep.subr.mxu0 0.0
        %613 = vmatpush1.msra.mxu0 0.0
        %614 = vmatprep.subr.mxu0 0.0
        %615 = vmatpush1.msra.mxu0 0.0
        %616 = vmatprep.subr.mxu0 0.0
        %617 = vmatpush1.msra.mxu0 0.0
        %618 = vmatprep.subr.mxu0 0.0
        %619 = vmatpush1.msra.mxu0 0.0
        %620 = vmatprep.subr.mxu0 0.0
        %621 = vmatpush1.msra.mxu0 0.0
        %622 = vmatprep.subr.mxu0 0.0
        %623 = vmatpush1.msra.mxu0 0.0
        %624 = vmatprep.subr.mxu0 0.0
        %625 = vmatpush1.msra.mxu0 0.0
        %626 = vmatprep.subr.mxu0 0.0
        %627 = vmatpush1.msra.mxu0 0.0
        %628 = vmatprep.subr.mxu0 0.0
        %629 = vmatpush1.msra.mxu0 0.0
        %630 = vmatprep.subr.mxu0 0.0
        %631 = vmatpush1.msra.mxu0 0.0
        %632 = vmatprep.subr.mxu0 0.0
        %633 = vmatpush1.msra.mxu0 0.0
        %634 = vmatprep.subr.mxu0 0.0
        %635 = vmatpush1.msra.mxu0 0.0
        %636 = vmatprep.subr.mxu0 0.0
        %637 = vmatpush1.msra.mxu0 0.0
        %638 = vmatprep.subr.mxu0 0.0
        %639 = vmatpush1.msra.mxu0 0.0
        %640 = vmatprep.mubr.f32.mxu0 0.0
        %641 = vmatmul.mubr.f32.gmra.mrb[0].mxu0 %v357
        %v642 = vpop.f32.mrb[0].mxu0
        %v643 = vadd.f32 %v328, %v642
        %v644 = vpop.f32.mrb[0].mxu0
        %v645 = vadd.f32 %v328, %v644
        %646 = vmatprep.mubr.f32.mxu0 0.0
        %647 = vmatmul.mubr.f32.gmra.mrb[0].mxu0 %v360
        %v648 = vpop.f32.mrb[0].mxu0
        %v649 = vadd.f32 %v333, %v648
        %v650 = vpop.f32.mrb[0].mxu0
        %v651 = vadd.f32 %v333, %v650
        %652 = vmatprep.mubr.f32.mxu0 0.0
        %653 = vmatmul.mubr.f32.gmra.mrb[0].mxu0 %v363
        %v654 = vpop.f32.mrb[0].mxu0
        %v655 = vadd.f32 %v338, %v654
        %v656 = vpop.f32.mrb[0].mxu0
        %v657 = vadd.f32 %v338, %v656
        %658 = vmatprep.mubr.f32.mxu0 0.0
        %659 = vmatmul.mubr.f32.gmra.mrb[0].mxu0 %v366
        %v660 = vpop.f32.mrb[0].mxu0
        %v661 = vadd.f32 %v343, %v660
        %v662 = vpop.f32.mrb[0].mxu0
        %v663 = vadd.f32 %v343, %v662
        %664 = vmatprep.mubr.f32.mxu0 0.0
        %665 = vmatmul.mubr.f32.gmra.mrb[0].mxu0 %v369
        %v666 = vpop.f32.mrb[0].mxu0
        %v667 = vadd.f32 %v348, %v666
        %v668 = vpop.f32.mrb[0].mxu0
        %v669 = vadd.f32 %v348, %v668
        %670 = vmatprep.mubr.f32.mxu0 0.0
        %671 = vmatmul.mubr.f32.gmra.mrb[0].mxu0 %v372
        %v672 = vpop.f32.mrb[0].mxu0
        %v673 = vadd.f32 %v353, %v672
        %v674 = vpop.f32.mrb[0].mxu0
        %v675 = vadd.f32 %v353, %v674
        %676 = vdwg.mxu0
        %677 = vmatprep.subr.mxu0 0.0
        %678 = vmatpush1.msra.mxu0 %v312
        %679 = vmatprep.subr.mxu0 0.0
        %680 = vmatpush1.msra.mxu0 0.0
        %681 = vmatprep.subr.mxu0 0.0
        %682 = vmatpush1.msra.mxu0 0.0
        %683 = vmatprep.subr.mxu0 0.0
        %684 = vmatpush1.msra.mxu0 0.0
        %685 = vmatprep.subr.mxu0 0.0
        %686 = vmatpush1.msra.mxu0 0.0
        %687 = vmatprep.subr.mxu0 0.0
        %688 = vmatpush1.msra.mxu0 0.0
        %689 = vmatprep.subr.mxu0 0.0
        %690 = vmatpush1.msra.mxu0 0.0
        %691 = vmatprep.subr.mxu0 0.0
        %692 = vmatpush1.msra.mxu0 0.0
        %693 = vmatprep.subr.mxu0 0.0
        %694 = vmatpush1.msra.mxu0 0.0
        %695 = vmatprep.subr.mxu0 0.0
        %696 = vmatpush1.msra.mxu0 0.0
        %697 = vmatprep.subr.mxu0 0.0
        %698 = vmatpush1.msra.mxu0 0.0
        %699 = vmatprep.subr.mxu0 0.0
        %700 = vmatpush1.msra.mxu0 0.0
        %701 = vmatprep.subr.mxu0 0.0
        %702 = vmatpush1.msra.mxu0 0.0
        %703 = vmatprep.subr.mxu0 0.0
        %704 = vmatpush1.msra.mxu0 0.0
        %705 = vmatprep.subr.mxu0 0.0
        %706 = vmatpush1.msra.mxu0 0.0
        %707 = vmatprep.subr.mxu0 0.0
        %708 = vmatpush1.msra.mxu0 0.0
        %709 = vmatprep.subr.mxu0 0.0
        %710 = vmatpush1.msra.mxu0 0.0
        %711 = vmatprep.subr.mxu0 0.0
        %712 = vmatpush1.msra.mxu0 0.0
        %713 = vmatprep.subr.mxu0 0.0
        %714 = vmatpush1.msra.mxu0 0.0
        %715 = vmatprep.subr.mxu0 0.0
        %716 = vmatpush1.msra.mxu0 0.0
        %717 = vmatprep.subr.mxu0 0.0
        %718 = vmatpush1.msra.mxu0 0.0
        %719 = vmatprep.subr.mxu0 0.0
        %720 = vmatpush1.msra.mxu0 0.0
        %721 = vmatprep.subr.mxu0 0.0
        %722 = vmatpush1.msra.mxu0 0.0
        %723 = vmatprep.subr.mxu0 0.0
        %724 = vmatpush1.msra.mxu0 0.0
        %725 = vmatprep.subr.mxu0 0.0
        %726 = vmatpush1.msra.mxu0 0.0
        %727 = vmatprep.subr.mxu0 0.0
        %728 = vmatpush1.msra.mxu0 0.0
        %729 = vmatprep.subr.mxu0 0.0
        %730 = vmatpush1.msra.mxu0 0.0
        %731 = vmatprep.subr.mxu0 0.0
        %732 = vmatpush1.msra.mxu0 0.0
        %733 = vmatprep.subr.mxu0 0.0
        %734 = vmatpush1.msra.mxu0 0.0
        %735 = vmatprep.subr.mxu0 0.0
        %736 = vmatpush1.msra.mxu0 0.0
        %737 = vmatprep.subr.mxu0 0.0
        %738 = vmatpush1.msra.mxu0 0.0
        %739 = vmatprep.subr.mxu0 0.0
        %740 = vmatpush1.msra.mxu0 0.0
        %741 = vmatprep.mubr.f32.mxu0 0.0
        %742 = vmatmul.mubr.f32.gmra.mrb[0].mxu0 %v357
        %v743 = vpop.f32.mrb[0].mxu0
        %v744 = vadd.f32 %v328, %v743
        %v745 = vpop.f32.mrb[0].mxu0
        %746 = vmatprep.mubr.f32.mxu0 0.0
        %747 = vmatmul.mubr.f32.gmra.mrb[0].mxu0 %v360
        %v748 = vpop.f32.mrb[0].mxu0
        %v749 = vadd.f32 %v333, %v748
        %v750 = vpop.f32.mrb[0].mxu0
        %751 = vmatprep.mubr.f32.mxu0 0.0
        %752 = vmatmul.mubr.f32.gmra.mrb[0].mxu0 %v363
        %v753 = vpop.f32.mrb[0].mxu0
        %v754 = vadd.f32 %v338, %v753
        %v755 = vpop.f32.mrb[0].mxu0
        %756 = vmatprep.mubr.f32.mxu0 0.0
        %757 = vmatmul.mubr.f32.gmra.mrb[0].mxu0 %v366
        %v758 = vpop.f32.mrb[0].mxu0
        %v759 = vadd.f32 %v343, %v758
        %v760 = vpop.f32.mrb[0].mxu0
        %761 = vmatprep.mubr.f32.mxu0 0.0
        %762 = vmatmul.mubr.f32.gmra.mrb[0].mxu0 %v369
        %v763 = vpop.f32.mrb[0].mxu0
        %v764 = vadd.f32 %v348, %v763
        %v765 = vpop.f32.mrb[0].mxu0
        %766 = vmatprep.mubr.f32.mxu0 0.0
        %767 = vmatmul.mubr.f32.gmra.mrb[0].mxu0 %v372
        %v768 = vpop.f32.mrb[0].mxu0
        %v769 = vadd.f32 %v353, %v768
        %v770 = vpop.f32.mrb[0].mxu0
        %771 = vdwg.mxu0
        %v772 = vmax.f32 %v441, 0.0
        %v773 = vmax.f32 %v443, 0.0
        %v774 = vmax.f32 %v542, 0.0
        %v775 = vmax.f32 %v544, 0.0
        %v776 = vmax.f32 %v643, 0.0
        %v777 = vmax.f32 %v645, 0.0
        %v778 = vmax.f32 %v744, 0.0
        %v779 = vmax.f32 %v447, 0.0
        %v780 = vmax.f32 %v449, 0.0
        %v781 = vmax.f32 %v548, 0.0
        %v782 = vmax.f32 %v550, 0.0
        %v783 = vmax.f32 %v649, 0.0
        %v784 = vmax.f32 %v651, 0.0
        %v785 = vmax.f32 %v749, 0.0
        %v786 = vmax.f32 %v453, 0.0
        %v787 = vmax.f32 %v455, 0.0
        %v788 = vmax.f32 %v554, 0.0
        %v789 = vmax.f32 %v556, 0.0
        %v790 = vmax.f32 %v655, 0.0
        %v791 = vmax.f32 %v657, 0.0
        %v792 = vmax.f32 %v754, 0.0
        %v793 = vmax.f32 %v459, 0.0
        %v794 = vmax.f32 %v461, 0.0
        %v795 = vmax.f32 %v560, 0.0
        %v796 = vmax.f32 %v562, 0.0
        %v797 = vmax.f32 %v661, 0.0
        %v798 = vmax.f32 %v663, 0.0
        %v799 = vmax.f32 %v759, 0.0
        %v800 = vmax.f32 %v465, 0.0
        %v801 = vmax.f32 %v467, 0.0
        %v802 = vmax.f32 %v566, 0.0
        %v803 = vmax.f32 %v568, 0.0
        %v804 = vmax.f32 %v667, 0.0
        %v805 = vmax.f32 %v669, 0.0
        %v806 = vmax.f32 %v764, 0.0
        %v807 = vmax.f32 %v471, 0.0
        %v808 = vmax.f32 %v473, 0.0
        %v809 = vmax.f32 %v572, 0.0
        %v810 = vmax.f32 %v574, 0.0
        %v811 = vmax.f32 %v673, 0.0
        %v812 = vmax.f32 %v675, 0.0
        %v813 = vmax.f32 %v769, 0.0
        %v814 = vmax.f32 %v772, %v786
        %v815 = vmax.f32 %v773, %v787
        %v816 = vmax.f32 %v774, %v788
        %v817 = vmax.f32 %v775, %v789
        %v818 = vmax.f32 %v776, %v790
        %v819 = vmax.f32 %v777, %v791
        %v820 = vmax.f32 %v778, %v792
        %v821 = vmax.f32 %v779, %v793
        %v822 = vmax.f32 %v780, %v794
        %v823 = vmax.f32 %v781, %v795
        %v824 = vmax.f32 %v782, %v796
        %v825 = vmax.f32 %v783, %v797
        %v826 = vmax.f32 %v784, %v798
        %v827 = vmax.f32 %v785, %v799
        %v828 = vmax.f32 %v786, %v800
        %v829 = vmax.f32 %v787, %v801
        %v830 = vmax.f32 %v788, %v802
        %v831 = vmax.f32 %v789, %v803
        %v832 = vmax.f32 %v790, %v804
        %v833 = vmax.f32 %v791, %v805
        %v834 = vmax.f32 %v792, %v806
        %v835 = vmax.f32 %v793, %v807
        %v836 = vmax.f32 %v794, %v808
        %v837 = vmax.f32 %v795, %v809
        %v838 = vmax.f32 %v796, %v810
        %v839 = vmax.f32 %v797, %v811
        %v840 = vmax.f32 %v798, %v812
        %v841 = vmax.f32 %v799, %v813
        %842 = vrot.lane.b32.xlu0 %v814, 127
        %v843 = vpop.permute.xlu0 %842
        %844 = vrot.lane.b32.xlu0 %v821, 127
        %v845 = vpop.permute.xlu0 %844
        %846 = vrot.lane.b32.xlu0 %v815, 127
        %v847 = vpop.permute.xlu0 %846
        %848 = vrot.lane.b32.xlu0 %v822, 127
        %v849 = vpop.permute.xlu0 %848
        %850 = vrot.lane.b32.xlu0 %v816, 127
        %v851 = vpop.permute.xlu0 %850
        %852 = vrot.lane.b32.xlu0 %v823, 127
        %v853 = vpop.permute.xlu0 %852
        %854 = vrot.lane.b32.xlu0 %v817, 127
        %v855 = vpop.permute.xlu0 %854
        %856 = vrot.lane.b32.xlu0 %v824, 127
        %v857 = vpop.permute.xlu0 %856
        %858 = vrot.lane.b32.xlu0 %v818, 127
        %v859 = vpop.permute.xlu0 %858
        %860 = vrot.lane.b32.xlu0 %v825, 127
        %v861 = vpop.permute.xlu0 %860
        %862 = vrot.lane.b32.xlu0 %v819, 127
        %v863 = vpop.permute.xlu0 %862
        %864 = vrot.lane.b32.xlu0 %v826, 127
        %v865 = vpop.permute.xlu0 %864
        %866 = vrot.lane.b32.xlu0 %v820, 127
        %v867 = vpop.permute.xlu0 %866
        %868 = vrot.lane.b32.xlu0 %v827, 127
        %v869 = vpop.permute.xlu0 %868
        %v870 = vlaneseq
        %v871 = vand.u32 %v870, 127
        %vm872 = vcmp.lt.s32.totalorder %v871, 127
        %v873 = vsel %vm872, %v863, %v867
        %v874 = vsel %vm872, %v865, %v869
        %v875 = vsel %vm872, %v859, %v863
        %v876 = vsel %vm872, %v861, %v865
        %v877 = vsel %vm872, %v855, %v859
        %v878 = vsel %vm872, %v857, %v861
        %v879 = vsel %vm872, %v851, %v855
        %v880 = vsel %vm872, %v853, %v857
        %v881 = vsel %vm872, %v847, %v851
        %v882 = vsel %vm872, %v849, %v853
        %v883 = vsel %vm872, %v843, %v847
        %v884 = vsel %vm872, %v845, %v849
        %v885 = vsel %vm872, %v867, %v843
        %v886 = vsel %vm872, %v869, %v845
        %v887 = vmax.f32 %v814, %v883
        %v888 = vmax.f32 %v815, %v881
        %v889 = vmax.f32 %v816, %v879
        %v890 = vmax.f32 %v817, %v877
        %v891 = vmax.f32 %v818, %v875
        %v892 = vmax.f32 %v819, %v873
        %v893 = vmax.f32 %v820, %v885
        %v894 = vmax.f32 %v821, %v884
        %v895 = vmax.f32 %v822, %v882
        %v896 = vmax.f32 %v823, %v880
        %v897 = vmax.f32 %v824, %v878
        %v898 = vmax.f32 %v825, %v876
        %v899 = vmax.f32 %v826, %v874
        %v900 = vmax.f32 %v827, %v886
        %901 = vrot.lane.b32.xlu0 %v828, 127
        %v902 = vpop.permute.xlu0 %901
        %903 = vrot.lane.b32.xlu0 %v835, 127
        %v904 = vpop.permute.xlu0 %903
        %905 = vrot.lane.b32.xlu0 %v829, 127
        %v906 = vpop.permute.xlu0 %905
        %907 = vrot.lane.b32.xlu0 %v836, 127
        %v908 = vpop.permute.xlu0 %907
        %909 = vrot.lane.b32.xlu0 %v830, 127
        %v910 = vpop.permute.xlu0 %909
        %911 = vrot.lane.b32.xlu0 %v837, 127
        %v912 = vpop.permute.xlu0 %911
        %913 = vrot.lane.b32.xlu0 %v831, 127
        %v914 = vpop.permute.xlu0 %913
        %915 = vrot.lane.b32.xlu0 %v838, 127
        %v916 = vpop.permute.xlu0 %915
        %917 = vrot.lane.b32.xlu0 %v832, 127
        %v918 = vpop.permute.xlu0 %917
        %919 = vrot.lane.b32.xlu0 %v839, 127
        %v920 = vpop.permute.xlu0 %919
        %921 = vrot.lane.b32.xlu0 %v833, 127
        %v922 = vpop.permute.xlu0 %921
        %923 = vrot.lane.b32.xlu0 %v840, 127
        %v924 = vpop.permute.xlu0 %923
        %925 = vrot.lane.b32.xlu0 %v834, 127
        %v926 = vpop.permute.xlu0 %925
        %927 = vrot.lane.b32.xlu0 %v841, 127
        %v928 = vpop.permute.xlu0 %927
        %v929 = vsel %vm872, %v922, %v926
        %v930 = vsel %vm872, %v924, %v928
        %v931 = vsel %vm872, %v918, %v922
        %v932 = vsel %vm872, %v920, %v924
        %v933 = vsel %vm872, %v914, %v918
        %v934 = vsel %vm872, %v916, %v920
        %v935 = vsel %vm872, %v910, %v914
        %v936 = vsel %vm872, %v912, %v916
        %v937 = vsel %vm872, %v906, %v910
        %v938 = vsel %vm872, %v908, %v912
        %v939 = vsel %vm872, %v902, %v906
        %v940 = vsel %vm872, %v904, %v908
        %v941 = vsel %vm872, %v926, %v902
        %v942 = vsel %vm872, %v928, %v904
        %v943 = vmax.f32 %v828, %v939
        %v944 = vmax.f32 %v829, %v937
        %v945 = vmax.f32 %v830, %v935
        %v946 = vmax.f32 %v831, %v933
        %v947 = vmax.f32 %v832, %v931
        %v948 = vmax.f32 %v833, %v929
        %v949 = vmax.f32 %v834, %v941
        %v950 = vmax.f32 %v835, %v940
        %v951 = vmax.f32 %v836, %v938
        %v952 = vmax.f32 %v837, %v936
        %v953 = vmax.f32 %v838, %v934
        %v954 = vmax.f32 %v839, %v932
        %v955 = vmax.f32 %v840, %v930
        %v956 = vmax.f32 %v841, %v942
        %957 = vrot.lane.b32.xlu0 %v887, 127
        %v958 = vpop.permute.xlu0 %957
        %959 = vrot.lane.b32.xlu0 %v894, 127
        %v960 = vpop.permute.xlu0 %959
        %961 = vrot.lane.b32.xlu0 %v888, 127
        %v962 = vpop.permute.xlu0 %961
        %963 = vrot.lane.b32.xlu0 %v895, 127
        %v964 = vpop.permute.xlu0 %963
        %965 = vrot.lane.b32.xlu0 %v889, 127
        %v966 = vpop.permute.xlu0 %965
        %967 = vrot.lane.b32.xlu0 %v896, 127
        %v968 = vpop.permute.xlu0 %967
        %969 = vrot.lane.b32.xlu0 %v890, 127
        %v970 = vpop.permute.xlu0 %969
        %971 = vrot.lane.b32.xlu0 %v897, 127
        %v972 = vpop.permute.xlu0 %971
        %973 = vrot.lane.b32.xlu0 %v891, 127
        %v974 = vpop.permute.xlu0 %973
        %975 = vrot.lane.b32.xlu0 %v898, 127
        %v976 = vpop.permute.xlu0 %975
        %977 = vrot.lane.b32.xlu0 %v892, 127
        %v978 = vpop.permute.xlu0 %977
        %979 = vrot.lane.b32.xlu0 %v899, 127
        %v980 = vpop.permute.xlu0 %979
        %981 = vrot.lane.b32.xlu0 %v893, 127
        %v982 = vpop.permute.xlu0 %981
        %983 = vrot.lane.b32.xlu0 %v900, 127
        %v984 = vpop.permute.xlu0 %983
        %v985 = vsel %vm872, %v978, %v982
        %v986 = vsel %vm872, %v980, %v984
        %v987 = vsel %vm872, %v974, %v978
        %v988 = vsel %vm872, %v976, %v980
        %v989 = vsel %vm872, %v970, %v974
        %v990 = vsel %vm872, %v972, %v976
        %v991 = vsel %vm872, %v966, %v970
        %v992 = vsel %vm872, %v968, %v972
        %v993 = vsel %vm872, %v962, %v966
        %v994 = vsel %vm872, %v964, %v968
        %v995 = vsel %vm872, %v958, %v962
        %v996 = vsel %vm872, %v960, %v964
        %v997 = vsel %vm872, %v982, %v958
        %v998 = vsel %vm872, %v984, %v960
        %999 = vrot.lane.b32.xlu0 %v943, 127
        %v1000 = vpop.permute.xlu0 %999
        %1001 = vrot.lane.b32.xlu0 %v950, 127
        %v1002 = vpop.permute.xlu0 %1001
        %1003 = vrot.lane.b32.xlu0 %v944, 127
        %v1004 = vpop.permute.xlu0 %1003
        %1005 = vrot.lane.b32.xlu0 %v951, 127
        %v1006 = vpop.permute.xlu0 %1005
        %1007 = vrot.lane.b32.xlu0 %v945, 127
        %v1008 = vpop.permute.xlu0 %1007
        %1009 = vrot.lane.b32.xlu0 %v952, 127
        %v1010 = vpop.permute.xlu0 %1009
        %1011 = vrot.lane.b32.xlu0 %v946, 127
        %v1012 = vpop.permute.xlu0 %1011
        %1013 = vrot.lane.b32.xlu0 %v953, 127
        %v1014 = vpop.permute.xlu0 %1013
        %1015 = vrot.lane.b32.xlu0 %v947, 127
        %v1016 = vpop.permute.xlu0 %1015
        %1017 = vrot.lane.b32.xlu0 %v954, 127
        %v1018 = vpop.permute.xlu0 %1017
        %1019 = vrot.lane.b32.xlu0 %v948, 127
        %v1020 = vpop.permute.xlu0 %1019
        %1021 = vrot.lane.b32.xlu0 %v955, 127
        %v1022 = vpop.permute.xlu0 %1021
        %1023 = vrot.lane.b32.xlu0 %v949, 127
        %v1024 = vpop.permute.xlu0 %1023
        %1025 = vrot.lane.b32.xlu0 %v956, 127
        %v1026 = vpop.permute.xlu0 %1025
        %v1027 = vsel %vm872, %v1020, %v1024
        %v1028 = vsel %vm872, %v1022, %v1026
        %v1029 = vsel %vm872, %v1016, %v1020
        %v1030 = vsel %vm872, %v1018, %v1022
        %v1031 = vsel %vm872, %v1012, %v1016
        %v1032 = vsel %vm872, %v1014, %v1018
        %v1033 = vsel %vm872, %v1008, %v1012
        %v1034 = vsel %vm872, %v1010, %v1014
        %v1035 = vsel %vm872, %v1004, %v1008
        %v1036 = vsel %vm872, %v1006, %v1010
        %v1037 = vsel %vm872, %v1000, %v1004
        %v1038 = vsel %vm872, %v1002, %v1006
        %v1039 = vsel %vm872, %v1024, %v1000
        %v1040 = vsel %vm872, %v1026, %v1002
        %v1041 = vpack.c.bf16 %v894, %v887
        %v1042 = vpack.c.bf16 %v895, %v888
        %v1043 = vpack.c.bf16 %v896, %v889
        %v1044 = vpack.c.bf16 %v897, %v890
        %v1045 = vpack.c.bf16 %v898, %v891
        %v1046 = vpack.c.bf16 %v899, %v892
        %v1047 = vpack.c.bf16 %v900, %v893
        %v1048 = vpack.c.bf16 %v996, %v995
        %v1049 = vpack.c.bf16 %v994, %v993
        %v1050 = vpack.c.bf16 %v992, %v991
        %v1051 = vpack.c.bf16 %v990, %v989
        %v1052 = vpack.c.bf16 %v988, %v987
        %v1053 = vpack.c.bf16 %v986, %v985
        %v1054 = vpack.c.bf16 %v998, %v997
        %v1055 = vpack.c.bf16 %v950, %v943
        %v1056 = vpack.c.bf16 %v951, %v944
        %v1057 = vpack.c.bf16 %v952, %v945
        %v1058 = vpack.c.bf16 %v953, %v946
        %v1059 = vpack.c.bf16 %v954, %v947
        %v1060 = vpack.c.bf16 %v955, %v948
        %v1061 = vpack.c.bf16 %v956, %v949
        %v1062 = vpack.c.bf16 %v1038, %v1037
        %v1063 = vpack.c.bf16 %v1036, %v1035
        %v1064 = vpack.c.bf16 %v1034, %v1033
        %v1065 = vpack.c.bf16 %v1032, %v1031
        %v1066 = vpack.c.bf16 %v1030, %v1029
        %v1067 = vpack.c.bf16 %v1028, %v1027
        %v1068 = vpack.c.bf16 %v1040, %v1039
        %v1069 = vld [vmem:[%s3] sm:$0xf]
        %v1070 = vld [vmem:[%s3 + $0x4] sm:$0xf]
        %v1071 = vld [vmem:[%s3 + $0x8] sm:$0xf]
        %v1072 = vld [vmem:[%s3 + $0xc] sm:$0xf]
        %v1073 = vld [vmem:[%s4] sm:$0xff]
        %v1074 = vld [vmem:[%s4 + $0x8] sm:$0xff]
        %v1075 = vld [vmem:[%s4 + $0x10] sm:$0xff]
        %v1076 = vld [vmem:[%s4 + $0x18] sm:$0xff]
        %1078 = vset.pattern.permute.xlu0 0
        %1079 = vperm.xlu0 %1078, %v1073
        %v1080 = vpop.permute.xlu0 %1079
        %1083 = vset.pattern.permute.xlu0 0
        %1084 = vperm.xlu0 %1083, %v1074
        %v1085 = vpop.permute.xlu0 %1084
        %1088 = vset.pattern.permute.xlu0 0
        %1089 = vperm.xlu0 %1088, %v1075
        %v1090 = vpop.permute.xlu0 %1089
        %1093 = vset.pattern.permute.xlu0 0
        %1094 = vperm.xlu0 %1093, %v1076
        %v1095 = vpop.permute.xlu0 %1094
        %v1101 = vunpack.c.l.b16 %v1069
        %v1102 = vunpack.c.l.b16 %v1070
        %v1103 = vunpack.c.l.b16 %v1071
        %v1104 = vunpack.c.l.b16 %v1072
        %v1105 = vpack.c.b16 %v1102, %v1101
        %v1106 = vpack.c.b16 %v1104, %v1103
        %vm1107 = vcmask 523264
        %v1109 = vsel %vm1107, %v1105, 0
        %v1112 = vsel %vm1107, %v1106, 0
        %1114 = vmatprep.subr.bf16.mxu0 %v1042
        %1115 = vmatpush1.bf16.msra.mxu0 %v1041
        %1116 = vmatprep.subr.bf16.mxu0 %v1049
        %1117 = vmatpush1.bf16.msra.mxu0 %v1048
        %1118 = vmatprep.subr.bf16.mxu0 %v1056
        %1119 = vmatpush1.bf16.msra.mxu0 %v1055
        %1120 = vmatprep.subr.bf16.mxu0 %v1063
        %1121 = vmatpush1.bf16.msra.mxu0 %v1062
        %1122 = vmatprep.subr.bf16.mxu0 0
        %1123 = vmatpush1.bf16.msra.mxu0 0
        %1124 = vmatprep.subr.bf16.mxu0 0
        %1125 = vmatpush1.bf16.msra.mxu0 0
        %1126 = vmatprep.subr.bf16.mxu0 0
        %1127 = vmatpush1.bf16.msra.mxu0 0
        %1128 = vmatprep.subr.bf16.mxu0 0
        %1129 = vmatpush1.bf16.msra.mxu0 0
        %1130 = vmatprep.subr.bf16.mxu0 0
        %1131 = vmatpush1.bf16.msra.mxu0 0
        %1132 = vmatprep.subr.bf16.mxu0 0
        %1133 = vmatpush1.bf16.msra.mxu0 0
        %1134 = vmatprep.subr.bf16.mxu0 0
        %1135 = vmatpush1.bf16.msra.mxu0 0
        %1136 = vmatprep.subr.bf16.mxu0 0
        %1137 = vmatpush1.bf16.msra.mxu0 0
        %1138 = vmatprep.subr.bf16.mxu0 0
        %1139 = vmatpush1.bf16.msra.mxu0 0
        %1140 = vmatprep.subr.bf16.mxu0 0
        %1141 = vmatpush1.bf16.msra.mxu0 0
        %1142 = vmatprep.subr.bf16.mxu0 0
        %1143 = vmatpush1.bf16.msra.mxu0 0
        %1144 = vmatprep.subr.bf16.mxu0 0
        %1145 = vmatpush1.bf16.msra.mxu0 0
        %1146 = vmatprep.mubr.bf16.mxu0 0
        %1147 = vmatmul.mubr.bf16.gmra.mrb[0].mxu0 %v1109
        %v1148 = vpop.f32.mrb[0].mxu0
        %v1149 = vadd.f32 %v1080, %v1148
        %v1150 = vpop.f32.mrb[0].mxu0
        %v1151 = vadd.f32 %v1080, %v1150
        %v1152 = vpop.f32.mrb[0].mxu0
        %v1153 = vadd.f32 %v1085, %v1152
        %v1154 = vpop.f32.mrb[0].mxu0
        %v1155 = vadd.f32 %v1085, %v1154
        %1156 = vmatprep.mubr.bf16.mxu0 0
        %1157 = vmatmul.mubr.bf16.gmra.mrb[0].mxu0 %v1112
        %v1158 = vpop.f32.mrb[0].mxu0
        %v1159 = vadd.f32 %v1090, %v1158
        %v1160 = vpop.f32.mrb[0].mxu0
        %v1161 = vadd.f32 %v1090, %v1160
        %v1162 = vpop.f32.mrb[0].mxu0
        %v1163 = vadd.f32 %v1095, %v1162
        %v1164 = vpop.f32.mrb[0].mxu0
        %v1165 = vadd.f32 %v1095, %v1164
        %1166 = vdwg.mxu0
        %1167 = vmatprep.subr.bf16.mxu0 %v1044
        %1168 = vmatpush1.bf16.msra.mxu0 %v1043
        %1169 = vmatprep.subr.bf16.mxu0 %v1051
        %1170 = vmatpush1.bf16.msra.mxu0 %v1050
        %1171 = vmatprep.subr.bf16.mxu0 %v1058
        %1172 = vmatpush1.bf16.msra.mxu0 %v1057
        %1173 = vmatprep.subr.bf16.mxu0 %v1065
        %1174 = vmatpush1.bf16.msra.mxu0 %v1064
        %1175 = vmatprep.subr.bf16.mxu0 0
        %1176 = vmatpush1.bf16.msra.mxu0 0
        %1177 = vmatprep.subr.bf16.mxu0 0
        %1178 = vmatpush1.bf16.msra.mxu0 0
        %1179 = vmatprep.subr.bf16.mxu0 0
        %1180 = vmatpush1.bf16.msra.mxu0 0
        %1181 = vmatprep.subr.bf16.mxu0 0
        %1182 = vmatpush1.bf16.msra.mxu0 0
        %1183 = vmatprep.subr.bf16.mxu0 0
        %1184 = vmatpush1.bf16.msra.mxu0 0
        %1185 = vmatprep.subr.bf16.mxu0 0
        %1186 = vmatpush1.bf16.msra.mxu0 0
        %1187 = vmatprep.subr.bf16.mxu0 0
        %1188 = vmatpush1.bf16.msra.mxu0 0
        %1189 = vmatprep.subr.bf16.mxu0 0
        %1190 = vmatpush1.bf16.msra.mxu0 0
        %1191 = vmatprep.subr.bf16.mxu0 0
        %1192 = vmatpush1.bf16.msra.mxu0 0
        %1193 = vmatprep.subr.bf16.mxu0 0
        %1194 = vmatpush1.bf16.msra.mxu0 0
        %1195 = vmatprep.subr.bf16.mxu0 0
        %1196 = vmatpush1.bf16.msra.mxu0 0
        %1197 = vmatprep.subr.bf16.mxu0 0
        %1198 = vmatpush1.bf16.msra.mxu0 0
        %1199 = vmatprep.mubr.bf16.mxu0 0
        %1200 = vmatmul.mubr.bf16.gmra.mrb[0].mxu0 %v1109
        %v1201 = vpop.f32.mrb[0].mxu0
        %v1202 = vadd.f32 %v1080, %v1201
        %v1203 = vpop.f32.mrb[0].mxu0
        %v1204 = vadd.f32 %v1080, %v1203
        %v1205 = vpop.f32.mrb[0].mxu0
        %v1206 = vadd.f32 %v1085, %v1205
        %v1207 = vpop.f32.mrb[0].mxu0
        %v1208 = vadd.f32 %v1085, %v1207
        %1209 = vmatprep.mubr.bf16.mxu0 0
        %1210 = vmatmul.mubr.bf16.gmra.mrb[0].mxu0 %v1112
        %v1211 = vpop.f32.mrb[0].mxu0
        %v1212 = vadd.f32 %v1090, %v1211
        %v1213 = vpop.f32.mrb[0].mxu0
        %v1214 = vadd.f32 %v1090, %v1213
        %v1215 = vpop.f32.mrb[0].mxu0
        %v1216 = vadd.f32 %v1095, %v1215
        %v1217 = vpop.f32.mrb[0].mxu0
        %v1218 = vadd.f32 %v1095, %v1217
        %1219 = vdwg.mxu0
        %1220 = vmatprep.subr.bf16.mxu0 %v1046
        %1221 = vmatpush1.bf16.msra.mxu0 %v1045
        %1222 = vmatprep.subr.bf16.mxu0 %v1053
        %1223 = vmatpush1.bf16.msra.mxu0 %v1052
        %1224 = vmatprep.subr.bf16.mxu0 %v1060
        %1225 = vmatpush1.bf16.msra.mxu0 %v1059
        %1226 = vmatprep.subr.bf16.mxu0 %v1067
        %1227 = vmatpush1.bf16.msra.mxu0 %v1066
        %1228 = vmatprep.subr.bf16.mxu0 0
        %1229 = vmatpush1.bf16.msra.mxu0 0
        %1230 = vmatprep.subr.bf16.mxu0 0
        %1231 = vmatpush1.bf16.msra.mxu0 0
        %1232 = vmatprep.subr.bf16.mxu0 0
        %1233 = vmatpush1.bf16.msra.mxu0 0
        %1234 = vmatprep.subr.bf16.mxu0 0
        %1235 = vmatpush1.bf16.msra.mxu0 0
        %1236 = vmatprep.subr.bf16.mxu0 0
        %1237 = vmatpush1.bf16.msra.mxu0 0
        %1238 = vmatprep.subr.bf16.mxu0 0
        %1239 = vmatpush1.bf16.msra.mxu0 0
        %1240 = vmatprep.subr.bf16.mxu0 0
        %1241 = vmatpush1.bf16.msra.mxu0 0
        %1242 = vmatprep.subr.bf16.mxu0 0
        %1243 = vmatpush1.bf16.msra.mxu0 0
        %1244 = vmatprep.subr.bf16.mxu0 0
        %1245 = vmatpush1.bf16.msra.mxu0 0
        %1246 = vmatprep.subr.bf16.mxu0 0
        %1247 = vmatpush1.bf16.msra.mxu0 0
        %1248 = vmatprep.subr.bf16.mxu0 0
        %1249 = vmatpush1.bf16.msra.mxu0 0
        %1250 = vmatprep.subr.bf16.mxu0 0
        %1251 = vmatpush1.bf16.msra.mxu0 0
        %1252 = vmatprep.mubr.bf16.mxu0 0
        %1253 = vmatmul.mubr.bf16.gmra.mrb[0].mxu0 %v1109
        %v1254 = vpop.f32.mrb[0].mxu0
        %v1255 = vadd.f32 %v1080, %v1254
        %v1256 = vpop.f32.mrb[0].mxu0
        %v1257 = vadd.f32 %v1080, %v1256
        %v1258 = vpop.f32.mrb[0].mxu0
        %v1259 = vadd.f32 %v1085, %v1258
        %v1260 = vpop.f32.mrb[0].mxu0
        %v1261 = vadd.f32 %v1085, %v1260
        %1262 = vmatprep.mubr.bf16.mxu0 0
        %1263 = vmatmul.mubr.bf16.gmra.mrb[0].mxu0 %v1112
        %v1264 = vpop.f32.mrb[0].mxu0
        %v1265 = vadd.f32 %v1090, %v1264
        %v1266 = vpop.f32.mrb[0].mxu0
        %v1267 = vadd.f32 %v1090, %v1266
        %v1268 = vpop.f32.mrb[0].mxu0
        %v1269 = vadd.f32 %v1095, %v1268
        %v1270 = vpop.f32.mrb[0].mxu0
        %v1271 = vadd.f32 %v1095, %v1270
        %1272 = vdwg.mxu0
        %1273 = vmatprep.subr.bf16.mxu0 0
        %1274 = vmatpush1.bf16.msra.mxu0 %v1047
        %1275 = vmatprep.subr.bf16.mxu0 0
        %1276 = vmatpush1.bf16.msra.mxu0 %v1054
        %1277 = vmatprep.subr.bf16.mxu0 0
        %1278 = vmatpush1.bf16.msra.mxu0 %v1061
        %1279 = vmatprep.subr.bf16.mxu0 0
        %1280 = vmatpush1.bf16.msra.mxu0 %v1068
        %1281 = vmatprep.subr.bf16.mxu0 0
        %1282 = vmatpush1.bf16.msra.mxu0 0
        %1283 = vmatprep.subr.bf16.mxu0 0
        %1284 = vmatpush1.bf16.msra.mxu0 0
        %1285 = vmatprep.subr.bf16.mxu0 0
        %1286 = vmatpush1.bf16.msra.mxu0 0
        %1287 = vmatprep.subr.bf16.mxu0 0
        %1288 = vmatpush1.bf16.msra.mxu0 0
        %1289 = vmatprep.subr.bf16.mxu0 0
        %1290 = vmatpush1.bf16.msra.mxu0 0
        %1291 = vmatprep.subr.bf16.mxu0 0
        %1292 = vmatpush1.bf16.msra.mxu0 0
        %1293 = vmatprep.subr.bf16.mxu0 0
        %1294 = vmatpush1.bf16.msra.mxu0 0
        %1295 = vmatprep.subr.bf16.mxu0 0
        %1296 = vmatpush1.bf16.msra.mxu0 0
        %1297 = vmatprep.subr.bf16.mxu0 0
        %1298 = vmatpush1.bf16.msra.mxu0 0
        %1299 = vmatprep.subr.bf16.mxu0 0
        %1300 = vmatpush1.bf16.msra.mxu0 0
        %1301 = vmatprep.subr.bf16.mxu0 0
        %1302 = vmatpush1.bf16.msra.mxu0 0
        %1303 = vmatprep.subr.bf16.mxu0 0
        %1304 = vmatpush1.bf16.msra.mxu0 0
        %1305 = vmatprep.mubr.bf16.mxu0 0
        %1306 = vmatmul.mubr.bf16.gmra.mrb[0].mxu0 %v1109
        %v1307 = vpop.f32.mrb[0].mxu0
        %v1308 = vadd.f32 %v1080, %v1307
        %v1309 = vpop.f32.mrb[0].mxu0
        %v1310 = vpop.f32.mrb[0].mxu0
        %v1311 = vadd.f32 %v1085, %v1310
        %v1312 = vpop.f32.mrb[0].mxu0
        %1313 = vmatprep.mubr.bf16.mxu0 0
        %1314 = vmatmul.mubr.bf16.gmra.mrb[0].mxu0 %v1112
        %v1315 = vpop.f32.mrb[0].mxu0
        %v1316 = vadd.f32 %v1090, %v1315
        %v1317 = vpop.f32.mrb[0].mxu0
        %v1318 = vpop.f32.mrb[0].mxu0
        %v1319 = vadd.f32 %v1095, %v1318
        %v1320 = vpop.f32.mrb[0].mxu0
        %1321 = vdwg.mxu0
        %v1322 = vmax.f32 %v1149, 0.0
        %v1323 = vmax.f32 %v1151, 0.0
        %v1324 = vmax.f32 %v1202, 0.0
        %v1325 = vmax.f32 %v1204, 0.0
        %v1326 = vmax.f32 %v1255, 0.0
        %v1327 = vmax.f32 %v1257, 0.0
        %v1328 = vmax.f32 %v1308, 0.0
        %v1329 = vmax.f32 %v1153, 0.0
        %v1330 = vmax.f32 %v1155, 0.0
        %v1331 = vmax.f32 %v1206, 0.0
        %v1332 = vmax.f32 %v1208, 0.0
        %v1333 = vmax.f32 %v1259, 0.0
        %v1334 = vmax.f32 %v1261, 0.0
        %v1335 = vmax.f32 %v1311, 0.0
        %v1336 = vmax.f32 %v1159, 0.0
        %v1337 = vmax.f32 %v1161, 0.0
        %v1338 = vmax.f32 %v1212, 0.0
        %v1339 = vmax.f32 %v1214, 0.0
        %v1340 = vmax.f32 %v1265, 0.0
        %v1341 = vmax.f32 %v1267, 0.0
        %v1342 = vmax.f32 %v1316, 0.0
        %v1343 = vmax.f32 %v1163, 0.0
        %v1344 = vmax.f32 %v1165, 0.0
        %v1345 = vmax.f32 %v1216, 0.0
        %v1346 = vmax.f32 %v1218, 0.0
        %v1347 = vmax.f32 %v1269, 0.0
        %v1348 = vmax.f32 %v1271, 0.0
        %v1349 = vmax.f32 %v1319, 0.0
        %1350 = vrot.lane.b32.xlu0 %v1322, 127
        %v1351 = vpop.permute.xlu0 %1350
        %1352 = vrot.lane.b32.xlu0 %v1329, 127
        %v1353 = vpop.permute.xlu0 %1352
        %1354 = vrot.lane.b32.xlu0 %v1336, 127
        %v1355 = vpop.permute.xlu0 %1354
        %1356 = vrot.lane.b32.xlu0 %v1343, 127
        %v1357 = vpop.permute.xlu0 %1356
        %1358 = vrot.lane.b32.xlu0 %v1323, 127
        %v1359 = vpop.permute.xlu0 %1358
        %1360 = vrot.lane.b32.xlu0 %v1330, 127
        %v1361 = vpop.permute.xlu0 %1360
        %1362 = vrot.lane.b32.xlu0 %v1337, 127
        %v1363 = vpop.permute.xlu0 %1362
        %1364 = vrot.lane.b32.xlu0 %v1344, 127
        %v1365 = vpop.permute.xlu0 %1364
        %1366 = vrot.lane.b32.xlu0 %v1324, 127
        %v1367 = vpop.permute.xlu0 %1366
        %1368 = vrot.lane.b32.xlu0 %v1331, 127
        %v1369 = vpop.permute.xlu0 %1368
        %1370 = vrot.lane.b32.xlu0 %v1338, 127
        %v1371 = vpop.permute.xlu0 %1370
        %1372 = vrot.lane.b32.xlu0 %v1345, 127
        %v1373 = vpop.permute.xlu0 %1372
        %1374 = vrot.lane.b32.xlu0 %v1325, 127
        %v1375 = vpop.permute.xlu0 %1374
        %1376 = vrot.lane.b32.xlu0 %v1332, 127
        %v1377 = vpop.permute.xlu0 %1376
        %1378 = vrot.lane.b32.xlu0 %v1339, 127
        %v1379 = vpop.permute.xlu0 %1378
        %1380 = vrot.lane.b32.xlu0 %v1346, 127
        %v1381 = vpop.permute.xlu0 %1380
        %1382 = vrot.lane.b32.xlu0 %v1326, 127
        %v1383 = vpop.permute.xlu0 %1382
        %1384 = vrot.lane.b32.xlu0 %v1333, 127
        %v1385 = vpop.permute.xlu0 %1384
        %1386 = vrot.lane.b32.xlu0 %v1340, 127
        %v1387 = vpop.permute.xlu0 %1386
        %1388 = vrot.lane.b32.xlu0 %v1347, 127
        %v1389 = vpop.permute.xlu0 %1388
        %1390 = vrot.lane.b32.xlu0 %v1327, 127
        %v1391 = vpop.permute.xlu0 %1390
        %1392 = vrot.lane.b32.xlu0 %v1334, 127
        %v1393 = vpop.permute.xlu0 %1392
        %1394 = vrot.lane.b32.xlu0 %v1341, 127
        %v1395 = vpop.permute.xlu0 %1394
        %1396 = vrot.lane.b32.xlu0 %v1348, 127
        %v1397 = vpop.permute.xlu0 %1396
        %1398 = vrot.lane.b32.xlu0 %v1328, 127
        %v1399 = vpop.permute.xlu0 %1398
        %1400 = vrot.lane.b32.xlu0 %v1335, 127
        %v1401 = vpop.permute.xlu0 %1400
        %1402 = vrot.lane.b32.xlu0 %v1342, 127
        %v1403 = vpop.permute.xlu0 %1402
        %1404 = vrot.lane.b32.xlu0 %v1349, 127
        %v1405 = vpop.permute.xlu0 %1404
        %v1406 = vsel %vm872, %v1391, %v1399
        %v1407 = vsel %vm872, %v1393, %v1401
        %v1408 = vsel %vm872, %v1395, %v1403
        %v1409 = vsel %vm872, %v1397, %v1405
        %v1410 = vsel %vm872, %v1383, %v1391
        %v1411 = vsel %vm872, %v1385, %v1393
        %v1412 = vsel %vm872, %v1387, %v1395
        %v1413 = vsel %vm872, %v1389, %v1397
        %v1414 = vsel %vm872, %v1375, %v1383
        %v1415 = vsel %vm872, %v1377, %v1385
        %v1416 = vsel %vm872, %v1379, %v1387
        %v1417 = vsel %vm872, %v1381, %v1389
        %v1418 = vsel %vm872, %v1367, %v1375
        %v1419 = vsel %vm872, %v1369, %v1377
        %v1420 = vsel %vm872, %v1371, %v1379
        %v1421 = vsel %vm872, %v1373, %v1381
        %v1422 = vsel %vm872, %v1359, %v1367
        %v1423 = vsel %vm872, %v1361, %v1369
        %v1424 = vsel %vm872, %v1363, %v1371
        %v1425 = vsel %vm872, %v1365, %v1373
        %v1426 = vsel %vm872, %v1351, %v1359
        %v1427 = vsel %vm872, %v1353, %v1361
        %v1428 = vsel %vm872, %v1355, %v1363
        %v1429 = vsel %vm872, %v1357, %v1365
        %v1430 = vsel %vm872, %v1399, %v1351
        %v1431 = vsel %vm872, %v1401, %v1353
        %v1432 = vsel %vm872, %v1403, %v1355
        %v1433 = vsel %vm872, %v1405, %v1357
        %v1434 = vmax.f32 %v1322, %v1426
        %v1435 = vmax.f32 %v1323, %v1422
        %v1436 = vmax.f32 %v1324, %v1418
        %v1437 = vmax.f32 %v1325, %v1414
        %v1438 = vmax.f32 %v1326, %v1410
        %v1439 = vmax.f32 %v1327, %v1406
        %v1440 = vmax.f32 %v1328, %v1430
        %v1441 = vmax.f32 %v1329, %v1427
        %v1442 = vmax.f32 %v1330, %v1423
        %v1443 = vmax.f32 %v1331, %v1419
        %v1444 = vmax.f32 %v1332, %v1415
        %v1445 = vmax.f32 %v1333, %v1411
        %v1446 = vmax.f32 %v1334, %v1407
        %v1447 = vmax.f32 %v1335, %v1431
        %v1448 = vmax.f32 %v1336, %v1428
        %v1449 = vmax.f32 %v1337, %v1424
        %v1450 = vmax.f32 %v1338, %v1420
        %v1451 = vmax.f32 %v1339, %v1416
        %v1452 = vmax.f32 %v1340, %v1412
        %v1453 = vmax.f32 %v1341, %v1408
        %v1454 = vmax.f32 %v1342, %v1432
        %v1455 = vmax.f32 %v1343, %v1429
        %v1456 = vmax.f32 %v1344, %v1425
        %v1457 = vmax.f32 %v1345, %v1421
        %v1458 = vmax.f32 %v1346, %v1417
        %v1459 = vmax.f32 %v1347, %v1413
        %v1460 = vmax.f32 %v1348, %v1409
        %v1461 = vmax.f32 %v1349, %v1433
        %1462 = vrot.lane.b32.xlu0 %v1434, 126
        %v1463 = vpop.permute.xlu0 %1462
        %1464 = vrot.lane.b32.xlu0 %v1441, 126
        %v1465 = vpop.permute.xlu0 %1464
        %1466 = vrot.lane.b32.xlu0 %v1448, 126
        %v1467 = vpop.permute.xlu0 %1466
        %1468 = vrot.lane.b32.xlu0 %v1455, 126
        %v1469 = vpop.permute.xlu0 %1468
        %1470 = vrot.lane.b32.xlu0 %v1435, 126
        %v1471 = vpop.permute.xlu0 %1470
        %1472 = vrot.lane.b32.xlu0 %v1442, 126
        %v1473 = vpop.permute.xlu0 %1472
        %1474 = vrot.lane.b32.xlu0 %v1449, 126
        %v1475 = vpop.permute.xlu0 %1474
        %1476 = vrot.lane.b32.xlu0 %v1456, 126
        %v1477 = vpop.permute.xlu0 %1476
        %1478 = vrot.lane.b32.xlu0 %v1436, 126
        %v1479 = vpop.permute.xlu0 %1478
        %1480 = vrot.lane.b32.xlu0 %v1443, 126
        %v1481 = vpop.permute.xlu0 %1480
        %1482 = vrot.lane.b32.xlu0 %v1450, 126
        %v1483 = vpop.permute.xlu0 %1482
        %1484 = vrot.lane.b32.xlu0 %v1457, 126
        %v1485 = vpop.permute.xlu0 %1484
        %1486 = vrot.lane.b32.xlu0 %v1437, 126
        %v1487 = vpop.permute.xlu0 %1486
        %1488 = vrot.lane.b32.xlu0 %v1444, 126
        %v1489 = vpop.permute.xlu0 %1488
        %1490 = vrot.lane.b32.xlu0 %v1451, 126
        %v1491 = vpop.permute.xlu0 %1490
        %1492 = vrot.lane.b32.xlu0 %v1458, 126
        %v1493 = vpop.permute.xlu0 %1492
        %1494 = vrot.lane.b32.xlu0 %v1438, 126
        %v1495 = vpop.permute.xlu0 %1494
        %1496 = vrot.lane.b32.xlu0 %v1445, 126
        %v1497 = vpop.permute.xlu0 %1496
        %1498 = vrot.lane.b32.xlu0 %v1452, 126
        %v1499 = vpop.permute.xlu0 %1498
        %1500 = vrot.lane.b32.xlu0 %v1459, 126
        %v1501 = vpop.permute.xlu0 %1500
        %1502 = vrot.lane.b32.xlu0 %v1439, 126
        %v1503 = vpop.permute.xlu0 %1502
        %1504 = vrot.lane.b32.xlu0 %v1446, 126
        %v1505 = vpop.permute.xlu0 %1504
        %1506 = vrot.lane.b32.xlu0 %v1453, 126
        %v1507 = vpop.permute.xlu0 %1506
        %1508 = vrot.lane.b32.xlu0 %v1460, 126
        %v1509 = vpop.permute.xlu0 %1508
        %1510 = vrot.lane.b32.xlu0 %v1440, 126
        %v1511 = vpop.permute.xlu0 %1510
        %1512 = vrot.lane.b32.xlu0 %v1447, 126
        %v1513 = vpop.permute.xlu0 %1512
        %1514 = vrot.lane.b32.xlu0 %v1454, 126
        %v1515 = vpop.permute.xlu0 %1514
        %1516 = vrot.lane.b32.xlu0 %v1461, 126
        %v1517 = vpop.permute.xlu0 %1516
        %vm1518 = vcmp.lt.s32.totalorder %v871, 126
        %v1519 = vsel %vm1518, %v1503, %v1511
        %v1520 = vsel %vm1518, %v1505, %v1513
        %v1521 = vsel %vm1518, %v1507, %v1515
        %v1522 = vsel %vm1518, %v1509, %v1517
        %v1523 = vsel %vm1518, %v1495, %v1503
        %v1524 = vsel %vm1518, %v1497, %v1505
        %v1525 = vsel %vm1518, %v1499, %v1507
        %v1526 = vsel %vm1518, %v1501, %v1509
        %v1527 = vsel %vm1518, %v1487, %v1495
        %v1528 = vsel %vm1518, %v1489, %v1497
        %v1529 = vsel %vm1518, %v1491, %v1499
        %v1530 = vsel %vm1518, %v1493, %v1501
        %v1531 = vsel %vm1518, %v1479, %v1487
        %v1532 = vsel %vm1518, %v1481, %v1489
        %v1533 = vsel %vm1518, %v1483, %v1491
        %v1534 = vsel %vm1518, %v1485, %v1493
        %v1535 = vsel %vm1518, %v1471, %v1479
        %v1536 = vsel %vm1518, %v1473, %v1481
        %v1537 = vsel %vm1518, %v1475, %v1483
        %v1538 = vsel %vm1518, %v1477, %v1485
        %v1539 = vsel %vm1518, %v1463, %v1471
        %v1540 = vsel %vm1518, %v1465, %v1473
        %v1541 = vsel %vm1518, %v1467, %v1475
        %v1542 = vsel %vm1518, %v1469, %v1477
        %v1543 = vsel %vm1518, %v1511, %v1463
        %v1544 = vsel %vm1518, %v1513, %v1465
        %v1545 = vsel %vm1518, %v1515, %v1467
        %v1546 = vsel %vm1518, %v1517, %v1469
        %v1547 = vmax.f32 %v1434, %v1539
        %v1548 = vmax.f32 %v1435, %v1535
        %v1549 = vmax.f32 %v1436, %v1531
        %v1550 = vmax.f32 %v1437, %v1527
        %v1551 = vmax.f32 %v1438, %v1523
        %v1552 = vmax.f32 %v1439, %v1519
        %v1553 = vmax.f32 %v1440, %v1543
        %v1554 = vmax.f32 %v1441, %v1540
        %v1555 = vmax.f32 %v1442, %v1536
        %v1556 = vmax.f32 %v1443, %v1532
        %v1557 = vmax.f32 %v1444, %v1528
        %v1558 = vmax.f32 %v1445, %v1524
        %v1559 = vmax.f32 %v1446, %v1520
        %v1560 = vmax.f32 %v1447, %v1544
        %v1561 = vmax.f32 %v1448, %v1541
        %v1562 = vmax.f32 %v1449, %v1537
        %v1563 = vmax.f32 %v1450, %v1533
        %v1564 = vmax.f32 %v1451, %v1529
        %v1565 = vmax.f32 %v1452, %v1525
        %v1566 = vmax.f32 %v1453, %v1521
        %v1567 = vmax.f32 %v1454, %v1545
        %v1568 = vmax.f32 %v1455, %v1542
        %v1569 = vmax.f32 %v1456, %v1538
        %v1570 = vmax.f32 %v1457, %v1534
        %v1571 = vmax.f32 %v1458, %v1530
        %v1572 = vmax.f32 %v1459, %v1526
        %v1573 = vmax.f32 %v1460, %v1522
        %v1574 = vmax.f32 %v1461, %v1546
        %v1575 = vld [vmem:[%s6] sm:$0xff]
        %v1576 = vld [vmem:[%s6 + $0x8] sm:$0xff]
        %v1577 = vld [vmem:[%s6 + $0x10] sm:$0xff]
        %v1578 = vld [vmem:[%s6 + $0x18] sm:$0xff]
        %v1579 = vld [vmem:[%s6 + $0x20] sm:$0xff]
        %v1580 = vld [vmem:[%s6 + $0x28] sm:$0xff]
        %v1581 = vld [vmem:[%s6 + $0x30] sm:$0xff]
        %v1582 = vld [vmem:[%s6 + $0x38] sm:$0xff]
        %v1583 = vld [vmem:[%s6 + $0x40] sm:$0xff]
        %v1584 = vld [vmem:[%s6 + $0x48] sm:$0xff]
        %v1585 = vld [vmem:[%s6 + $0x50] sm:$0xff]
        %v1586 = vld [vmem:[%s6 + $0x58] sm:$0xff]
        %v1587 = vld [vmem:[%s6 + $0x60] sm:$0xff]
        %v1588 = vld [vmem:[%s6 + $0x68] sm:$0xff]
        %v1589 = vld [vmem:[%s6 + $0x70] sm:$0xff]
        %v1590 = vld [vmem:[%s6 + $0x78] sm:$0xff]
        %v1591 = vld [vmem:[%s6 + $0x80] sm:$0xff]
        %v1592 = vld [vmem:[%s6 + $0x88] sm:$0xff]
        %v1593 = vld [vmem:[%s6 + $0x90] sm:$0xff]
        %v1594 = vld [vmem:[%s6 + $0x98] sm:$0xff]
        %v1595 = vld [vmem:[%s6 + $0xa0] sm:$0xff]
        %v1596 = vld [vmem:[%s6 + $0xa8] sm:$0xff]
        %v1597 = vld [vmem:[%s6 + $0xb0] sm:$0xff]
        %v1598 = vld [vmem:[%s6 + $0xb8] sm:$0xff]
        %v1599 = vld [vmem:[%s6 + $0xc0] sm:$0xff]
        %v1600 = vld [vmem:[%s6 + $0xc8] sm:$0xff]
        %v1601 = vld [vmem:[%s6 + $0xd0] sm:$0xff]
        %v1602 = vld [vmem:[%s6 + $0xd8] sm:$0xff]
        %v1603 = vld [vmem:[%s6 + $0xe0] sm:$0xff]
        %v1604 = vld [vmem:[%s6 + $0xe8] sm:$0xff]
        %v1605 = vld [vmem:[%s6 + $0xf0] sm:$0xff]
        %v1606 = vld [vmem:[%s6 + $0xf8] sm:$0xff]
        %v1607 = vld [vmem:[%s6 + $0x100] sm:$0xff]
        %v1608 = vld [vmem:[%s6 + $0x108] sm:$0xff]
        %v1609 = vld [vmem:[%s6 + $0x110] sm:$0xff]
        %v1610 = vld [vmem:[%s6 + $0x118] sm:$0xff]
        %v1611 = vld [vmem:[%s6 + $0x120] sm:$0xff]
        %v1612 = vld [vmem:[%s6 + $0x128] sm:$0xff]
        %v1613 = vld [vmem:[%s6 + $0x130] sm:$0xff]
        %v1614 = vld [vmem:[%s6 + $0x138] sm:$0xff]
        %v1615 = vld [vmem:[%s6 + $0x140] sm:$0xff]
        %v1616 = vld [vmem:[%s6 + $0x148] sm:$0xff]
        %v1617 = vld [vmem:[%s6 + $0x150] sm:$0xff]
        %v1618 = vld [vmem:[%s6 + $0x158] sm:$0xff]
        %v1619 = vld [vmem:[%s6 + $0x160] sm:$0xff]
        %v1620 = vld [vmem:[%s6 + $0x168] sm:$0xff]
        %v1621 = vld [vmem:[%s6 + $0x170] sm:$0xff]
        %v1622 = vld [vmem:[%s6 + $0x178] sm:$0xff]
        %v1623 = vld [vmem:[%s6 + $0x180] sm:$0xff]
        %v1624 = vld [vmem:[%s6 + $0x188] sm:$0xff]
        %v1625 = vld [vmem:[%s6 + $0x190] sm:$0xff]
        %v1626 = vld [vmem:[%s6 + $0x198] sm:$0xff]
        %v1627 = vld [vmem:[%s6 + $0x1a0] sm:$0xff]
        %v1628 = vld [vmem:[%s6 + $0x1a8] sm:$0xff]
        %v1629 = vld [vmem:[%s6 + $0x1b0] sm:$0xff]
        %v1630 = vld [vmem:[%s6 + $0x1b8] sm:$0xff]
        %v1631 = vld [vmem:[%s6 + $0x1c0] sm:$0xff]
        %v1632 = vld [vmem:[%s6 + $0x1c8] sm:$0xff]
        %v1633 = vld [vmem:[%s6 + $0x1d0] sm:$0xff]
        %v1634 = vld [vmem:[%s6 + $0x1d8] sm:$0xff]
        %v1635 = vld [vmem:[%s6 + $0x1e0] sm:$0xff]
        %v1636 = vld [vmem:[%s6 + $0x1e8] sm:$0xff]
        %v1637 = vld [vmem:[%s6 + $0x1f0] sm:$0xff]
        %v1638 = vld [vmem:[%s6 + $0x1f8] sm:$0xff]
        %v1639 = vld [vmem:[%s6 + $0x200] sm:$0xff]
        %v1640 = vld [vmem:[%s6 + $0x208] sm:$0xff]
        %v1641 = vld [vmem:[%s6 + $0x210] sm:$0xff]
        %v1642 = vld [vmem:[%s6 + $0x218] sm:$0xff]
        %v1643 = vld [vmem:[%s6 + $0x220] sm:$0xff]
        %v1644 = vld [vmem:[%s6 + $0x228] sm:$0xff]
        %v1645 = vld [vmem:[%s6 + $0x230] sm:$0xff]
        %v1646 = vld [vmem:[%s6 + $0x238] sm:$0xff]
        %v1647 = vld [vmem:[%s6 + $0x240] sm:$0xff]
        %v1648 = vld [vmem:[%s6 + $0x248] sm:$0xff]
        %v1649 = vld [vmem:[%s6 + $0x250] sm:$0xff]
        %v1650 = vld [vmem:[%s6 + $0x258] sm:$0xff]
        %v1651 = vld [vmem:[%s6 + $0x260] sm:$0xff]
        %v1652 = vld [vmem:[%s6 + $0x268] sm:$0xff]
        %v1653 = vld [vmem:[%s6 + $0x270] sm:$0xff]
        %v1654 = vld [vmem:[%s6 + $0x278] sm:$0xff]
        %v1655 = vld [vmem:[%s6 + $0x280] sm:$0xff]
        %v1656 = vld [vmem:[%s6 + $0x288] sm:$0xff]
        %v1657 = vld [vmem:[%s6 + $0x290] sm:$0xff]
        %v1658 = vld [vmem:[%s6 + $0x298] sm:$0xff]
        %v1659 = vld [vmem:[%s6 + $0x2a0] sm:$0xff]
        %v1660 = vld [vmem:[%s6 + $0x2a8] sm:$0xff]
        %v1661 = vld [vmem:[%s6 + $0x2b0] sm:$0xff]
        %v1662 = vld [vmem:[%s6 + $0x2b8] sm:$0xff]
        %v1663 = vld [vmem:[%s6 + $0x2c0] sm:$0xff]
        %v1664 = vld [vmem:[%s6 + $0x2c8] sm:$0xff]
        %v1665 = vld [vmem:[%s6 + $0x2d0] sm:$0xff]
        %v1666 = vld [vmem:[%s6 + $0x2d8] sm:$0xff]
        %v1667 = vld [vmem:[%s6 + $0x2e0] sm:$0xff]
        %v1668 = vld [vmem:[%s6 + $0x2e8] sm:$0xff]
        %v1669 = vld [vmem:[%s6 + $0x2f0] sm:$0xff]
        %v1670 = vld [vmem:[%s6 + $0x2f8] sm:$0xff]
        %v1671 = vld [vmem:[%s6 + $0x300] sm:$0xff]
        %v1672 = vld [vmem:[%s6 + $0x308] sm:$0xff]
        %v1673 = vld [vmem:[%s6 + $0x310] sm:$0xff]
        %v1674 = vld [vmem:[%s6 + $0x318] sm:$0xff]
        %v1675 = vld [vmem:[%s6 + $0x320] sm:$0xff]
        %v1676 = vld [vmem:[%s6 + $0x328] sm:$0xff]
        %v1677 = vld [vmem:[%s6 + $0x330] sm:$0xff]
        %v1678 = vld [vmem:[%s6 + $0x338] sm:$0xff]
        %v1679 = vld [vmem:[%s6 + $0x340] sm:$0xff]
        %v1680 = vld [vmem:[%s6 + $0x348] sm:$0xff]
        %v1681 = vld [vmem:[%s6 + $0x350] sm:$0xff]
        %v1682 = vld [vmem:[%s6 + $0x358] sm:$0xff]
        %v1683 = vld [vmem:[%s6 + $0x360] sm:$0xff]
        %v1684 = vld [vmem:[%s6 + $0x368] sm:$0xff]
        %v1685 = vld [vmem:[%s6 + $0x370] sm:$0xff]
        %v1686 = vld [vmem:[%s6 + $0x378] sm:$0xff]
        %v1687 = vld [vmem:[%s5] sm:$0xff]
        %v1688 = vld [vmem:[%s5 + $0x8] sm:$0xff]
        %v1689 = vld [vmem:[%s5 + $0x10] sm:$0xff]
        %v1690 = vld [vmem:[%s5 + $0x18] sm:$0xff]
        %v1691 = vld [vmem:[%s5 + $0x20] sm:$0xff]
        %v1692 = vld [vmem:[%s5 + $0x28] sm:$0xff]
        %v1693 = vld [vmem:[%s5 + $0x30] sm:$0xff]
        %v1694 = vld [vmem:[%s5 + $0x38] sm:$0xff]
        %v1695 = vld [vmem:[%s5 + $0x40] sm:$0xff]
        %v1696 = vld [vmem:[%s5 + $0x48] sm:$0xff]
        %v1697 = vld [vmem:[%s5 + $0x50] sm:$0xff]
        %v1698 = vld [vmem:[%s5 + $0x58] sm:$0xff]
        %v1699 = vld [vmem:[%s5 + $0x60] sm:$0xff]
        %v1700 = vld [vmem:[%s5 + $0x68] sm:$0xff]
        %v1701 = vld [vmem:[%s5 + $0x70] sm:$0xff]
        %v1702 = vld [vmem:[%s5 + $0x78] sm:$0xff]
        %v1703 = vld [vmem:[%s5 + $0x80] sm:$0xff]
        %v1704 = vld [vmem:[%s5 + $0x88] sm:$0xff]
        %v1705 = vld [vmem:[%s5 + $0x90] sm:$0xff]
        %v1706 = vld [vmem:[%s5 + $0x98] sm:$0xff]
        %v1707 = vld [vmem:[%s5 + $0xa0] sm:$0xff]
        %v1708 = vld [vmem:[%s5 + $0xa8] sm:$0xff]
        %v1709 = vld [vmem:[%s5 + $0xb0] sm:$0xff]
        %v1710 = vld [vmem:[%s5 + $0xb8] sm:$0xff]
        %v1711 = vld [vmem:[%s5 + $0xc0] sm:$0xff]
        %v1712 = vld [vmem:[%s5 + $0xc8] sm:$0xff]
        %v1713 = vld [vmem:[%s5 + $0xd0] sm:$0xff]
        %v1714 = vld [vmem:[%s5 + $0xd8] sm:$0xff]
        %v1715 = vmul.f32 %v1687, %v1547
        %v1716 = vmul.f32 %v1688, %v1548
        %v1717 = vmul.f32 %v1689, %v1549
        %v1718 = vmul.f32 %v1690, %v1550
        %v1719 = vmul.f32 %v1691, %v1551
        %v1720 = vmul.f32 %v1692, %v1552
        %v1721 = vmul.f32 %v1693, %v1553
        %v1722 = vmul.f32 %v1694, %v1554
        %v1723 = vmul.f32 %v1695, %v1555
        %v1724 = vmul.f32 %v1696, %v1556
        %v1725 = vmul.f32 %v1697, %v1557
        %v1726 = vmul.f32 %v1698, %v1558
        %v1727 = vmul.f32 %v1699, %v1559
        %v1728 = vmul.f32 %v1700, %v1560
        %v1729 = vmul.f32 %v1701, %v1561
        %v1730 = vmul.f32 %v1702, %v1562
        %v1731 = vmul.f32 %v1703, %v1563
        %v1732 = vmul.f32 %v1704, %v1564
        %v1733 = vmul.f32 %v1705, %v1565
        %v1734 = vmul.f32 %v1706, %v1566
        %v1735 = vmul.f32 %v1707, %v1567
        %v1736 = vmul.f32 %v1708, %v1568
        %v1737 = vmul.f32 %v1709, %v1569
        %v1738 = vmul.f32 %v1710, %v1570
        %v1739 = vmul.f32 %v1711, %v1571
        %v1740 = vmul.f32 %v1712, %v1572
        %v1741 = vmul.f32 %v1713, %v1573
        %v1742 = vmul.f32 %v1714, %v1574
        %1743 = vmatprep.subr.mxu0 0.0
        %1744 = vmatpush1.msra.mxu0 %v1575
        %1745 = vmatprep.subr.mxu0 0.0
        %1746 = vmatpush1.msra.mxu0 %v1576
        %1747 = vmatprep.subr.mxu0 0.0
        %1748 = vmatpush1.msra.mxu0 %v1577
        %1749 = vmatprep.subr.mxu0 0.0
        %1750 = vmatpush1.msra.mxu0 %v1578
        %1751 = vmatprep.subr.mxu0 0.0
        %1752 = vmatpush1.msra.mxu0 %v1579
        %1753 = vmatprep.subr.mxu0 0.0
        %1754 = vmatpush1.msra.mxu0 %v1580
        %1755 = vmatprep.subr.mxu0 0.0
        %1756 = vmatpush1.msra.mxu0 %v1581
        %1757 = vmatprep.subr.mxu0 0.0
        %1758 = vmatpush1.msra.mxu0 %v1582
        %1759 = vmatprep.subr.mxu0 0.0
        %1760 = vmatpush1.msra.mxu0 %v1583
        %1761 = vmatprep.subr.mxu0 0.0
        %1762 = vmatpush1.msra.mxu0 %v1584
        %1763 = vmatprep.subr.mxu0 0.0
        %1764 = vmatpush1.msra.mxu0 %v1585
        %1765 = vmatprep.subr.mxu0 0.0
        %1766 = vmatpush1.msra.mxu0 %v1586
        %1767 = vmatprep.subr.mxu0 0.0
        %1768 = vmatpush1.msra.mxu0 %v1587
        %1769 = vmatprep.subr.mxu0 0.0
        %1770 = vmatpush1.msra.mxu0 %v1588
        %1771 = vmatprep.subr.mxu0 0.0
        %1772 = vmatpush1.msra.mxu0 %v1589
        %1773 = vmatprep.subr.mxu0 0.0
        %1774 = vmatpush1.msra.mxu0 %v1590
        %1775 = vmatprep.subr.mxu0 0.0
        %1776 = vmatpush1.msra.mxu0 %v1591
        %1777 = vmatprep.subr.mxu0 0.0
        %1778 = vmatpush1.msra.mxu0 %v1592
        %1779 = vmatprep.subr.mxu0 0.0
        %1780 = vmatpush1.msra.mxu0 %v1593
        %1781 = vmatprep.subr.mxu0 0.0
        %1782 = vmatpush1.msra.mxu0 %v1594
        %1783 = vmatprep.subr.mxu0 0.0
        %1784 = vmatpush1.msra.mxu0 %v1595
        %1785 = vmatprep.subr.mxu0 0.0
        %1786 = vmatpush1.msra.mxu0 %v1596
        %1787 = vmatprep.subr.mxu0 0.0
        %1788 = vmatpush1.msra.mxu0 %v1597
        %1789 = vmatprep.subr.mxu0 0.0
        %1790 = vmatpush1.msra.mxu0 %v1598
        %1791 = vmatprep.subr.mxu0 0.0
        %1792 = vmatpush1.msra.mxu0 %v1599
        %1793 = vmatprep.subr.mxu0 0.0
        %1794 = vmatpush1.msra.mxu0 %v1600
        %1795 = vmatprep.subr.mxu0 0.0
        %1796 = vmatpush1.msra.mxu0 %v1601
        %1797 = vmatprep.subr.mxu0 0.0
        %1798 = vmatpush1.msra.mxu0 %v1602
        %1799 = vmatprep.subr.mxu0 0.0
        %1800 = vmatpush1.msra.mxu0 %v1603
        %1801 = vmatprep.subr.mxu0 0.0
        %1802 = vmatpush1.msra.mxu0 %v1604
        %1803 = vmatprep.subr.mxu0 0.0
        %1804 = vmatpush1.msra.mxu0 %v1605
        %1805 = vmatprep.subr.mxu0 0.0
        %1806 = vmatpush1.msra.mxu0 %v1606
        %1807 = vmatprep.mubr.f32.mxu0 %v1716
        %1808 = vmatmul.mubr.f32.gmra.mrb[0].mxu0 %v1715
        %v1809 = vpop.f32.mrb[0].mxu0
        %v1810 = vadd.f32 0.0, %v1809
        %v1811 = vpop.f32.mrb[0].mxu0
        %1812 = vmatprep.mubr.f32.mxu0 %v1723
        %1813 = vmatmul.mubr.f32.gmra.mrb[0].mxu0 %v1722
        %v1814 = vpop.f32.mrb[0].mxu0
        %v1815 = vadd.f32 0.0, %v1814
        %v1816 = vpop.f32.mrb[0].mxu0
        %1817 = vmatprep.mubr.f32.mxu0 %v1730
        %1818 = vmatmul.mubr.f32.gmra.mrb[0].mxu0 %v1729
        %v1819 = vpop.f32.mrb[0].mxu0
        %v1820 = vadd.f32 0.0, %v1819
        %v1821 = vpop.f32.mrb[0].mxu0
        %1822 = vmatprep.mubr.f32.mxu0 %v1737
        %1823 = vmatmul.mubr.f32.gmra.mrb[0].mxu0 %v1736
        %v1824 = vpop.f32.mrb[0].mxu0
        %v1825 = vadd.f32 0.0, %v1824
        %v1826 = vpop.f32.mrb[0].mxu0
        %1827 = vdwg.mxu0
        %1828 = vmatprep.subr.mxu0 0.0
        %1829 = vmatpush1.msra.mxu0 %v1607
        %1830 = vmatprep.subr.mxu0 0.0
        %1831 = vmatpush1.msra.mxu0 %v1608
        %1832 = vmatprep.subr.mxu0 0.0
        %1833 = vmatpush1.msra.mxu0 %v1609
        %1834 = vmatprep.subr.mxu0 0.0
        %1835 = vmatpush1.msra.mxu0 %v1610
        %1836 = vmatprep.subr.mxu0 0.0
        %1837 = vmatpush1.msra.mxu0 %v1611
        %1838 = vmatprep.subr.mxu0 0.0
        %1839 = vmatpush1.msra.mxu0 %v1612
        %1840 = vmatprep.subr.mxu0 0.0
        %1841 = vmatpush1.msra.mxu0 %v1613
        %1842 = vmatprep.subr.mxu0 0.0
        %1843 = vmatpush1.msra.mxu0 %v1614
        %1844 = vmatprep.subr.mxu0 0.0
        %1845 = vmatpush1.msra.mxu0 %v1615
        %1846 = vmatprep.subr.mxu0 0.0
        %1847 = vmatpush1.msra.mxu0 %v1616
        %1848 = vmatprep.subr.mxu0 0.0
        %1849 = vmatpush1.msra.mxu0 %v1617
        %1850 = vmatprep.subr.mxu0 0.0
        %1851 = vmatpush1.msra.mxu0 %v1618
        %1852 = vmatprep.subr.mxu0 0.0
        %1853 = vmatpush1.msra.mxu0 %v1619
        %1854 = vmatprep.subr.mxu0 0.0
        %1855 = vmatpush1.msra.mxu0 %v1620
        %1856 = vmatprep.subr.mxu0 0.0
        %1857 = vmatpush1.msra.mxu0 %v1621
        %1858 = vmatprep.subr.mxu0 0.0
        %1859 = vmatpush1.msra.mxu0 %v1622
        %1860 = vmatprep.subr.mxu0 0.0
        %1861 = vmatpush1.msra.mxu0 %v1623
        %1862 = vmatprep.subr.mxu0 0.0
        %1863 = vmatpush1.msra.mxu0 %v1624
        %1864 = vmatprep.subr.mxu0 0.0
        %1865 = vmatpush1.msra.mxu0 %v1625
        %1866 = vmatprep.subr.mxu0 0.0
        %1867 = vmatpush1.msra.mxu0 %v1626
        %1868 = vmatprep.subr.mxu0 0.0
        %1869 = vmatpush1.msra.mxu0 %v1627
        %1870 = vmatprep.subr.mxu0 0.0
        %1871 = vmatpush1.msra.mxu0 %v1628
        %1872 = vmatprep.subr.mxu0 0.0
        %1873 = vmatpush1.msra.mxu0 %v1629
        %1874 = vmatprep.subr.mxu0 0.0
        %1875 = vmatpush1.msra.mxu0 %v1630
        %1876 = vmatprep.subr.mxu0 0.0
        %1877 = vmatpush1.msra.mxu0 %v1631
        %1878 = vmatprep.subr.mxu0 0.0
        %1879 = vmatpush1.msra.mxu0 %v1632
        %1880 = vmatprep.subr.mxu0 0.0
        %1881 = vmatpush1.msra.mxu0 %v1633
        %1882 = vmatprep.subr.mxu0 0.0
        %1883 = vmatpush1.msra.mxu0 %v1634
        %1884 = vmatprep.subr.mxu0 0.0
        %1885 = vmatpush1.msra.mxu0 %v1635
        %1886 = vmatprep.subr.mxu0 0.0
        %1887 = vmatpush1.msra.mxu0 %v1636
        %1888 = vmatprep.subr.mxu0 0.0
        %1889 = vmatpush1.msra.mxu0 %v1637
        %1890 = vmatprep.subr.mxu0 0.0
        %1891 = vmatpush1.msra.mxu0 %v1638
        %1892 = vmatprep.mubr.f32.mxu0 %v1718
        %1893 = vmatmul.mubr.f32.gmra.mrb[0].mxu0 %v1717
        %v1894 = vpop.f32.mrb[0].mxu0
        %v1895 = vadd.f32 %v1810, %v1894
        %v1896 = vpop.f32.mrb[0].mxu0
        %1897 = vmatprep.mubr.f32.mxu0 %v1725
        %1898 = vmatmul.mubr.f32.gmra.mrb[0].mxu0 %v1724
        %v1899 = vpop.f32.mrb[0].mxu0
        %v1900 = vadd.f32 %v1815, %v1899
        %v1901 = vpop.f32.mrb[0].mxu0
        %1902 = vmatprep.mubr.f32.mxu0 %v1732
        %1903 = vmatmul.mubr.f32.gmra.mrb[0].mxu0 %v1731
        %v1904 = vpop.f32.mrb[0].mxu0
        %v1905 = vadd.f32 %v1820, %v1904
        %v1906 = vpop.f32.mrb[0].mxu0
        %1907 = vmatprep.mubr.f32.mxu0 %v1739
        %1908 = vmatmul.mubr.f32.gmra.mrb[0].mxu0 %v1738
        %v1909 = vpop.f32.mrb[0].mxu0
        %v1910 = vadd.f32 %v1825, %v1909
        %v1911 = vpop.f32.mrb[0].mxu0
        %1912 = vdwg.mxu0
        %1913 = vmatprep.subr.mxu0 0.0
        %1914 = vmatpush1.msra.mxu0 %v1639
        %1915 = vmatprep.subr.mxu0 0.0
        %1916 = vmatpush1.msra.mxu0 %v1640
        %1917 = vmatprep.subr.mxu0 0.0
        %1918 = vmatpush1.msra.mxu0 %v1641
        %1919 = vmatprep.subr.mxu0 0.0
        %1920 = vmatpush1.msra.mxu0 %v1642
        %1921 = vmatprep.subr.mxu0 0.0
        %1922 = vmatpush1.msra.mxu0 %v1643
        %1923 = vmatprep.subr.mxu0 0.0
        %1924 = vmatpush1.msra.mxu0 %v1644
        %1925 = vmatprep.subr.mxu0 0.0
        %1926 = vmatpush1.msra.mxu0 %v1645
        %1927 = vmatprep.subr.mxu0 0.0
        %1928 = vmatpush1.msra.mxu0 %v1646
        %1929 = vmatprep.subr.mxu0 0.0
        %1930 = vmatpush1.msra.mxu0 %v1647
        %1931 = vmatprep.subr.mxu0 0.0
        %1932 = vmatpush1.msra.mxu0 %v1648
        %1933 = vmatprep.subr.mxu0 0.0
        %1934 = vmatpush1.msra.mxu0 %v1649
        %1935 = vmatprep.subr.mxu0 0.0
        %1936 = vmatpush1.msra.mxu0 %v1650
        %1937 = vmatprep.subr.mxu0 0.0
        %1938 = vmatpush1.msra.mxu0 %v1651
        %1939 = vmatprep.subr.mxu0 0.0
        %1940 = vmatpush1.msra.mxu0 %v1652
        %1941 = vmatprep.subr.mxu0 0.0
        %1942 = vmatpush1.msra.mxu0 %v1653
        %1943 = vmatprep.subr.mxu0 0.0
        %1944 = vmatpush1.msra.mxu0 %v1654
        %1945 = vmatprep.subr.mxu0 0.0
        %1946 = vmatpush1.msra.mxu0 %v1655
        %1947 = vmatprep.subr.mxu0 0.0
        %1948 = vmatpush1.msra.mxu0 %v1656
        %1949 = vmatprep.subr.mxu0 0.0
        %1950 = vmatpush1.msra.mxu0 %v1657
        %1951 = vmatprep.subr.mxu0 0.0
        %1952 = vmatpush1.msra.mxu0 %v1658
        %1953 = vmatprep.subr.mxu0 0.0
        %1954 = vmatpush1.msra.mxu0 %v1659
        %1955 = vmatprep.subr.mxu0 0.0
        %1956 = vmatpush1.msra.mxu0 %v1660
        %1957 = vmatprep.subr.mxu0 0.0
        %1958 = vmatpush1.msra.mxu0 %v1661
        %1959 = vmatprep.subr.mxu0 0.0
        %1960 = vmatpush1.msra.mxu0 %v1662
        %1961 = vmatprep.subr.mxu0 0.0
        %1962 = vmatpush1.msra.mxu0 %v1663
        %1963 = vmatprep.subr.mxu0 0.0
        %1964 = vmatpush1.msra.mxu0 %v1664
        %1965 = vmatprep.subr.mxu0 0.0
        %1966 = vmatpush1.msra.mxu0 %v1665
        %1967 = vmatprep.subr.mxu0 0.0
        %1968 = vmatpush1.msra.mxu0 %v1666
        %1969 = vmatprep.subr.mxu0 0.0
        %1970 = vmatpush1.msra.mxu0 %v1667
        %1971 = vmatprep.subr.mxu0 0.0
        %1972 = vmatpush1.msra.mxu0 %v1668
        %1973 = vmatprep.subr.mxu0 0.0
        %1974 = vmatpush1.msra.mxu0 %v1669
        %1975 = vmatprep.subr.mxu0 0.0
        %1976 = vmatpush1.msra.mxu0 %v1670
        %1977 = vmatprep.mubr.f32.mxu0 %v1720
        %1978 = vmatmul.mubr.f32.gmra.mrb[0].mxu0 %v1719
        %v1979 = vpop.f32.mrb[0].mxu0
        %v1980 = vadd.f32 %v1895, %v1979
        %v1981 = vpop.f32.mrb[0].mxu0
        %1982 = vmatprep.mubr.f32.mxu0 %v1727
        %1983 = vmatmul.mubr.f32.gmra.mrb[0].mxu0 %v1726
        %v1984 = vpop.f32.mrb[0].mxu0
        %v1985 = vadd.f32 %v1900, %v1984
        %v1986 = vpop.f32.mrb[0].mxu0
        %1987 = vmatprep.mubr.f32.mxu0 %v1734
        %1988 = vmatmul.mubr.f32.gmra.mrb[0].mxu0 %v1733
        %v1989 = vpop.f32.mrb[0].mxu0
        %v1990 = vadd.f32 %v1905, %v1989
        %v1991 = vpop.f32.mrb[0].mxu0
        %1992 = vmatprep.mubr.f32.mxu0 %v1741
        %1993 = vmatmul.mubr.f32.gmra.mrb[0].mxu0 %v1740
        %v1994 = vpop.f32.mrb[0].mxu0
        %v1995 = vadd.f32 %v1910, %v1994
        %v1996 = vpop.f32.mrb[0].mxu0
        %1997 = vdwg.mxu0
        %1998 = vmatprep.subr.mxu0 0.0
        %1999 = vmatpush1.msra.mxu0 %v1671
        %2000 = vmatprep.subr.mxu0 0.0
        %2001 = vmatpush1.msra.mxu0 %v1672
        %2002 = vmatprep.subr.mxu0 0.0
        %2003 = vmatpush1.msra.mxu0 %v1673
        %2004 = vmatprep.subr.mxu0 0.0
        %2005 = vmatpush1.msra.mxu0 %v1674
        %2006 = vmatprep.subr.mxu0 0.0
        %2007 = vmatpush1.msra.mxu0 %v1675
        %2008 = vmatprep.subr.mxu0 0.0
        %2009 = vmatpush1.msra.mxu0 %v1676
        %2010 = vmatprep.subr.mxu0 0.0
        %2011 = vmatpush1.msra.mxu0 %v1677
        %2012 = vmatprep.subr.mxu0 0.0
        %2013 = vmatpush1.msra.mxu0 %v1678
        %2014 = vmatprep.subr.mxu0 0.0
        %2015 = vmatpush1.msra.mxu0 %v1679
        %2016 = vmatprep.subr.mxu0 0.0
        %2017 = vmatpush1.msra.mxu0 %v1680
        %2018 = vmatprep.subr.mxu0 0.0
        %2019 = vmatpush1.msra.mxu0 %v1681
        %2020 = vmatprep.subr.mxu0 0.0
        %2021 = vmatpush1.msra.mxu0 %v1682
        %2022 = vmatprep.subr.mxu0 0.0
        %2023 = vmatpush1.msra.mxu0 %v1683
        %2024 = vmatprep.subr.mxu0 0.0
        %2025 = vmatpush1.msra.mxu0 %v1684
        %2026 = vmatprep.subr.mxu0 0.0
        %2027 = vmatpush1.msra.mxu0 %v1685
        %2028 = vmatprep.subr.mxu0 0.0
        %2029 = vmatpush1.msra.mxu0 %v1686
        %2030 = vmatprep.subr.mxu0 0.0
        %2031 = vmatpush1.msra.mxu0 0.0
        %2032 = vmatprep.subr.mxu0 0.0
        %2033 = vmatpush1.msra.mxu0 0.0
        %2034 = vmatprep.subr.mxu0 0.0
        %2035 = vmatpush1.msra.mxu0 0.0
        %2036 = vmatprep.subr.mxu0 0.0
        %2037 = vmatpush1.msra.mxu0 0.0
        %2038 = vmatprep.subr.mxu0 0.0
        %2039 = vmatpush1.msra.mxu0 0.0
        %2040 = vmatprep.subr.mxu0 0.0
        %2041 = vmatpush1.msra.mxu0 0.0
        %2042 = vmatprep.subr.mxu0 0.0
        %2043 = vmatpush1.msra.mxu0 0.0
        %2044 = vmatprep.subr.mxu0 0.0
        %2045 = vmatpush1.msra.mxu0 0.0
        %2046 = vmatprep.subr.mxu0 0.0
        %2047 = vmatpush1.msra.mxu0 0.0
        %2048 = vmatprep.subr.mxu0 0.0
        %2049 = vmatpush1.msra.mxu0 0.0
        %2050 = vmatprep.subr.mxu0 0.0
        %2051 = vmatpush1.msra.mxu0 0.0
        %2052 = vmatprep.subr.mxu0 0.0
        %2053 = vmatpush1.msra.mxu0 0.0
        %2054 = vmatprep.subr.mxu0 0.0
        %2055 = vmatpush1.msra.mxu0 0.0
        %2056 = vmatprep.subr.mxu0 0.0
        %2057 = vmatpush1.msra.mxu0 0.0
        %2058 = vmatprep.subr.mxu0 0.0
        %2059 = vmatpush1.msra.mxu0 0.0
        %2060 = vmatprep.subr.mxu0 0.0
        %2061 = vmatpush1.msra.mxu0 0.0
        %2062 = vmatprep.mubr.f32.mxu0 0.0
        %2063 = vmatmul.mubr.f32.gmra.mrb[0].mxu0 %v1721
        %v2064 = vpop.f32.mrb[0].mxu0
        %v2065 = vadd.f32 %v1980, %v2064
        %v2066 = vpop.f32.mrb[0].mxu0
        %2067 = vmatprep.mubr.f32.mxu0 0.0
        %2068 = vmatmul.mubr.f32.gmra.mrb[0].mxu0 %v1728
        %v2069 = vpop.f32.mrb[0].mxu0
        %v2070 = vadd.f32 %v1985, %v2069
        %v2071 = vpop.f32.mrb[0].mxu0
        %2072 = vmatprep.mubr.f32.mxu0 0.0
        %2073 = vmatmul.mubr.f32.gmra.mrb[0].mxu0 %v1735
        %v2074 = vpop.f32.mrb[0].mxu0
        %v2075 = vadd.f32 %v1990, %v2074
        %v2076 = vpop.f32.mrb[0].mxu0
        %2077 = vmatprep.mubr.f32.mxu0 0.0
        %2078 = vmatmul.mubr.f32.gmra.mrb[0].mxu0 %v1742
        %v2079 = vpop.f32.mrb[0].mxu0
        %v2080 = vadd.f32 %v1995, %v2079
        %v2081 = vpop.f32.mrb[0].mxu0
        %2082 = vdwg.mxu0
        %s2083 = scalar_lea.vmem %s5, 224
        %v2084 = vld [vmem:[%s2083] sm:$0xff]
        %v2085 = vld [vmem:[%s2083 + $0x8] sm:$0xff]
        %v2086 = vld [vmem:[%s2083 + $0x10] sm:$0xff]
        %v2087 = vld [vmem:[%s2083 + $0x18] sm:$0xff]
        %v2088 = vld [vmem:[%s2083 + $0x20] sm:$0xff]
        %v2089 = vld [vmem:[%s2083 + $0x28] sm:$0xff]
        %v2090 = vld [vmem:[%s2083 + $0x30] sm:$0xff]
        %v2091 = vld [vmem:[%s2083 + $0x38] sm:$0xff]
        %v2092 = vld [vmem:[%s2083 + $0x40] sm:$0xff]
        %v2093 = vld [vmem:[%s2083 + $0x48] sm:$0xff]
        %v2094 = vld [vmem:[%s2083 + $0x50] sm:$0xff]
        %v2095 = vld [vmem:[%s2083 + $0x58] sm:$0xff]
        %v2096 = vld [vmem:[%s2083 + $0x60] sm:$0xff]
        %v2097 = vld [vmem:[%s2083 + $0x68] sm:$0xff]
        %v2098 = vld [vmem:[%s2083 + $0x70] sm:$0xff]
        %v2099 = vld [vmem:[%s2083 + $0x78] sm:$0xff]
        %v2100 = vld [vmem:[%s2083 + $0x80] sm:$0xff]
        %v2101 = vld [vmem:[%s2083 + $0x88] sm:$0xff]
        %v2102 = vld [vmem:[%s2083 + $0x90] sm:$0xff]
        %v2103 = vld [vmem:[%s2083 + $0x98] sm:$0xff]
        %v2104 = vld [vmem:[%s2083 + $0xa0] sm:$0xff]
        %v2105 = vld [vmem:[%s2083 + $0xa8] sm:$0xff]
        %v2106 = vld [vmem:[%s2083 + $0xb0] sm:$0xff]
        %v2107 = vld [vmem:[%s2083 + $0xb8] sm:$0xff]
        %v2108 = vld [vmem:[%s2083 + $0xc0] sm:$0xff]
        %v2109 = vld [vmem:[%s2083 + $0xc8] sm:$0xff]
        %v2110 = vld [vmem:[%s2083 + $0xd0] sm:$0xff]
        %v2111 = vld [vmem:[%s2083 + $0xd8] sm:$0xff]
        %v2112 = vmul.f32 %v2084, %v1547
        %v2113 = vmul.f32 %v2085, %v1548
        %v2114 = vmul.f32 %v2086, %v1549
        %v2115 = vmul.f32 %v2087, %v1550
        %v2116 = vmul.f32 %v2088, %v1551
        %v2117 = vmul.f32 %v2089, %v1552
        %v2118 = vmul.f32 %v2090, %v1553
        %v2119 = vmul.f32 %v2091, %v1554
        %v2120 = vmul.f32 %v2092, %v1555
        %v2121 = vmul.f32 %v2093, %v1556
        %v2122 = vmul.f32 %v2094, %v1557
        %v2123 = vmul.f32 %v2095, %v1558
        %v2124 = vmul.f32 %v2096, %v1559
        %v2125 = vmul.f32 %v2097, %v1560
        %v2126 = vmul.f32 %v2098, %v1561
        %v2127 = vmul.f32 %v2099, %v1562
        %v2128 = vmul.f32 %v2100, %v1563
        %v2129 = vmul.f32 %v2101, %v1564
        %v2130 = vmul.f32 %v2102, %v1565
        %v2131 = vmul.f32 %v2103, %v1566
        %v2132 = vmul.f32 %v2104, %v1567
        %v2133 = vmul.f32 %v2105, %v1568
        %v2134 = vmul.f32 %v2106, %v1569
        %v2135 = vmul.f32 %v2107, %v1570
        %v2136 = vmul.f32 %v2108, %v1571
        %v2137 = vmul.f32 %v2109, %v1572
        %v2138 = vmul.f32 %v2110, %v1573
        %v2139 = vmul.f32 %v2111, %v1574
        %2140 = vmatprep.subr.mxu0 0.0
        %2141 = vmatpush1.msra.mxu0 %v1575
        %2142 = vmatprep.subr.mxu0 0.0
        %2143 = vmatpush1.msra.mxu0 %v1576
        %2144 = vmatprep.subr.mxu0 0.0
        %2145 = vmatpush1.msra.mxu0 %v1577
        %2146 = vmatprep.subr.mxu0 0.0
        %2147 = vmatpush1.msra.mxu0 %v1578
        %2148 = vmatprep.subr.mxu0 0.0
        %2149 = vmatpush1.msra.mxu0 %v1579
        %2150 = vmatprep.subr.mxu0 0.0
        %2151 = vmatpush1.msra.mxu0 %v1580
        %2152 = vmatprep.subr.mxu0 0.0
        %2153 = vmatpush1.msra.mxu0 %v1581
        %2154 = vmatprep.subr.mxu0 0.0
        %2155 = vmatpush1.msra.mxu0 %v1582
        %2156 = vmatprep.subr.mxu0 0.0
        %2157 = vmatpush1.msra.mxu0 %v1583
        %2158 = vmatprep.subr.mxu0 0.0
        %2159 = vmatpush1.msra.mxu0 %v1584
        %2160 = vmatprep.subr.mxu0 0.0
        %2161 = vmatpush1.msra.mxu0 %v1585
        %2162 = vmatprep.subr.mxu0 0.0
        %2163 = vmatpush1.msra.mxu0 %v1586
        %2164 = vmatprep.subr.mxu0 0.0
        %2165 = vmatpush1.msra.mxu0 %v1587
        %2166 = vmatprep.subr.mxu0 0.0
        %2167 = vmatpush1.msra.mxu0 %v1588
        %2168 = vmatprep.subr.mxu0 0.0
        %2169 = vmatpush1.msra.mxu0 %v1589
        %2170 = vmatprep.subr.mxu0 0.0
        %2171 = vmatpush1.msra.mxu0 %v1590
        %2172 = vmatprep.subr.mxu0 0.0
        %2173 = vmatpush1.msra.mxu0 %v1591
        %2174 = vmatprep.subr.mxu0 0.0
        %2175 = vmatpush1.msra.mxu0 %v1592
        %2176 = vmatprep.subr.mxu0 0.0
        %2177 = vmatpush1.msra.mxu0 %v1593
        %2178 = vmatprep.subr.mxu0 0.0
        %2179 = vmatpush1.msra.mxu0 %v1594
        %2180 = vmatprep.subr.mxu0 0.0
        %2181 = vmatpush1.msra.mxu0 %v1595
        %2182 = vmatprep.subr.mxu0 0.0
        %2183 = vmatpush1.msra.mxu0 %v1596
        %2184 = vmatprep.subr.mxu0 0.0
        %2185 = vmatpush1.msra.mxu0 %v1597
        %2186 = vmatprep.subr.mxu0 0.0
        %2187 = vmatpush1.msra.mxu0 %v1598
        %2188 = vmatprep.subr.mxu0 0.0
        %2189 = vmatpush1.msra.mxu0 %v1599
        %2190 = vmatprep.subr.mxu0 0.0
        %2191 = vmatpush1.msra.mxu0 %v1600
        %2192 = vmatprep.subr.mxu0 0.0
        %2193 = vmatpush1.msra.mxu0 %v1601
        %2194 = vmatprep.subr.mxu0 0.0
        %2195 = vmatpush1.msra.mxu0 %v1602
        %2196 = vmatprep.subr.mxu0 0.0
        %2197 = vmatpush1.msra.mxu0 %v1603
        %2198 = vmatprep.subr.mxu0 0.0
        %2199 = vmatpush1.msra.mxu0 %v1604
        %2200 = vmatprep.subr.mxu0 0.0
        %2201 = vmatpush1.msra.mxu0 %v1605
        %2202 = vmatprep.subr.mxu0 0.0
        %2203 = vmatpush1.msra.mxu0 %v1606
        %2204 = vmatprep.mubr.f32.mxu0 %v2113
        %2205 = vmatmul.mubr.f32.gmra.mrb[0].mxu0 %v2112
        %v2206 = vpop.f32.mrb[0].mxu0
        %v2207 = vadd.f32 0.0, %v2206
        %v2208 = vpop.f32.mrb[0].mxu0
        %2209 = vmatprep.mubr.f32.mxu0 %v2120
        %2210 = vmatmul.mubr.f32.gmra.mrb[0].mxu0 %v2119
        %v2211 = vpop.f32.mrb[0].mxu0
        %v2212 = vadd.f32 0.0, %v2211
        %v2213 = vpop.f32.mrb[0].mxu0
        %2214 = vmatprep.mubr.f32.mxu0 %v2127
        %2215 = vmatmul.mubr.f32.gmra.mrb[0].mxu0 %v2126
        %v2216 = vpop.f32.mrb[0].mxu0
        %v2217 = vadd.f32 0.0, %v2216
        %v2218 = vpop.f32.mrb[0].mxu0
        %2219 = vmatprep.mubr.f32.mxu0 %v2134
        %2220 = vmatmul.mubr.f32.gmra.mrb[0].mxu0 %v2133
        %v2221 = vpop.f32.mrb[0].mxu0
        %v2222 = vadd.f32 0.0, %v2221
        %v2223 = vpop.f32.mrb[0].mxu0
        %2224 = vdwg.mxu0
        %2225 = vmatprep.subr.mxu0 0.0
        %2226 = vmatpush1.msra.mxu0 %v1607
        %2227 = vmatprep.subr.mxu0 0.0
        %2228 = vmatpush1.msra.mxu0 %v1608
        %2229 = vmatprep.subr.mxu0 0.0
        %2230 = vmatpush1.msra.mxu0 %v1609
        %2231 = vmatprep.subr.mxu0 0.0
        %2232 = vmatpush1.msra.mxu0 %v1610
        %2233 = vmatprep.subr.mxu0 0.0
        %2234 = vmatpush1.msra.mxu0 %v1611
        %2235 = vmatprep.subr.mxu0 0.0
        %2236 = vmatpush1.msra.mxu0 %v1612
        %2237 = vmatprep.subr.mxu0 0.0
        %2238 = vmatpush1.msra.mxu0 %v1613
        %2239 = vmatprep.subr.mxu0 0.0
        %2240 = vmatpush1.msra.mxu0 %v1614
        %2241 = vmatprep.subr.mxu0 0.0
        %2242 = vmatpush1.msra.mxu0 %v1615
        %2243 = vmatprep.subr.mxu0 0.0
        %2244 = vmatpush1.msra.mxu0 %v1616
        %2245 = vmatprep.subr.mxu0 0.0
        %2246 = vmatpush1.msra.mxu0 %v1617
        %2247 = vmatprep.subr.mxu0 0.0
        %2248 = vmatpush1.msra.mxu0 %v1618
        %2249 = vmatprep.subr.mxu0 0.0
        %2250 = vmatpush1.msra.mxu0 %v1619
        %2251 = vmatprep.subr.mxu0 0.0
        %2252 = vmatpush1.msra.mxu0 %v1620
        %2253 = vmatprep.subr.mxu0 0.0
        %2254 = vmatpush1.msra.mxu0 %v1621
        %2255 = vmatprep.subr.mxu0 0.0
        %2256 = vmatpush1.msra.mxu0 %v1622
        %2257 = vmatprep.subr.mxu0 0.0
        %2258 = vmatpush1.msra.mxu0 %v1623
        %2259 = vmatprep.subr.mxu0 0.0
        %2260 = vmatpush1.msra.mxu0 %v1624
        %2261 = vmatprep.subr.mxu0 0.0
        %2262 = vmatpush1.msra.mxu0 %v1625
        %2263 = vmatprep.subr.mxu0 0.0
        %2264 = vmatpush1.msra.mxu0 %v1626
        %2265 = vmatprep.subr.mxu0 0.0
        %2266 = vmatpush1.msra.mxu0 %v1627
        %2267 = vmatprep.subr.mxu0 0.0
        %2268 = vmatpush1.msra.mxu0 %v1628
        %2269 = vmatprep.subr.mxu0 0.0
        %2270 = vmatpush1.msra.mxu0 %v1629
        %2271 = vmatprep.subr.mxu0 0.0
        %2272 = vmatpush1.msra.mxu0 %v1630
        %2273 = vmatprep.subr.mxu0 0.0
        %2274 = vmatpush1.msra.mxu0 %v1631
        %2275 = vmatprep.subr.mxu0 0.0
        %2276 = vmatpush1.msra.mxu0 %v1632
        %2277 = vmatprep.subr.mxu0 0.0
        %2278 = vmatpush1.msra.mxu0 %v1633
        %2279 = vmatprep.subr.mxu0 0.0
        %2280 = vmatpush1.msra.mxu0 %v1634
        %2281 = vmatprep.subr.mxu0 0.0
        %2282 = vmatpush1.msra.mxu0 %v1635
        %2283 = vmatprep.subr.mxu0 0.0
        %2284 = vmatpush1.msra.mxu0 %v1636
        %2285 = vmatprep.subr.mxu0 0.0
        %2286 = vmatpush1.msra.mxu0 %v1637
        %2287 = vmatprep.subr.mxu0 0.0
        %2288 = vmatpush1.msra.mxu0 %v1638
        %2289 = vmatprep.mubr.f32.mxu0 %v2115
        %2290 = vmatmul.mubr.f32.gmra.mrb[0].mxu0 %v2114
        %v2291 = vpop.f32.mrb[0].mxu0
        %v2292 = vadd.f32 %v2207, %v2291
        %v2293 = vpop.f32.mrb[0].mxu0
        %2294 = vmatprep.mubr.f32.mxu0 %v2122
        %2295 = vmatmul.mubr.f32.gmra.mrb[0].mxu0 %v2121
        %v2296 = vpop.f32.mrb[0].mxu0
        %v2297 = vadd.f32 %v2212, %v2296
        %v2298 = vpop.f32.mrb[0].mxu0
        %2299 = vmatprep.mubr.f32.mxu0 %v2129
        %2300 = vmatmul.mubr.f32.gmra.mrb[0].mxu0 %v2128
        %v2301 = vpop.f32.mrb[0].mxu0
        %v2302 = vadd.f32 %v2217, %v2301
        %v2303 = vpop.f32.mrb[0].mxu0
        %2304 = vmatprep.mubr.f32.mxu0 %v2136
        %2305 = vmatmul.mubr.f32.gmra.mrb[0].mxu0 %v2135
        %v2306 = vpop.f32.mrb[0].mxu0
        %v2307 = vadd.f32 %v2222, %v2306
        %v2308 = vpop.f32.mrb[0].mxu0
        %2309 = vdwg.mxu0
        %2310 = vmatprep.subr.mxu0 0.0
        %2311 = vmatpush1.msra.mxu0 %v1639
        %2312 = vmatprep.subr.mxu0 0.0
        %2313 = vmatpush1.msra.mxu0 %v1640
        %2314 = vmatprep.subr.mxu0 0.0
        %2315 = vmatpush1.msra.mxu0 %v1641
        %2316 = vmatprep.subr.mxu0 0.0
        %2317 = vmatpush1.msra.mxu0 %v1642
        %2318 = vmatprep.subr.mxu0 0.0
        %2319 = vmatpush1.msra.mxu0 %v1643
        %2320 = vmatprep.subr.mxu0 0.0
        %2321 = vmatpush1.msra.mxu0 %v1644
        %2322 = vmatprep.subr.mxu0 0.0
        %2323 = vmatpush1.msra.mxu0 %v1645
        %2324 = vmatprep.subr.mxu0 0.0
        %2325 = vmatpush1.msra.mxu0 %v1646
        %2326 = vmatprep.subr.mxu0 0.0
        %2327 = vmatpush1.msra.mxu0 %v1647
        %2328 = vmatprep.subr.mxu0 0.0
        %2329 = vmatpush1.msra.mxu0 %v1648
        %2330 = vmatprep.subr.mxu0 0.0
        %2331 = vmatpush1.msra.mxu0 %v1649
        %2332 = vmatprep.subr.mxu0 0.0
        %2333 = vmatpush1.msra.mxu0 %v1650
        %2334 = vmatprep.subr.mxu0 0.0
        %2335 = vmatpush1.msra.mxu0 %v1651
        %2336 = vmatprep.subr.mxu0 0.0
        %2337 = vmatpush1.msra.mxu0 %v1652
        %2338 = vmatprep.subr.mxu0 0.0
        %2339 = vmatpush1.msra.mxu0 %v1653
        %2340 = vmatprep.subr.mxu0 0.0
        %2341 = vmatpush1.msra.mxu0 %v1654
        %2342 = vmatprep.subr.mxu0 0.0
        %2343 = vmatpush1.msra.mxu0 %v1655
        %2344 = vmatprep.subr.mxu0 0.0
        %2345 = vmatpush1.msra.mxu0 %v1656
        %2346 = vmatprep.subr.mxu0 0.0
        %2347 = vmatpush1.msra.mxu0 %v1657
        %2348 = vmatprep.subr.mxu0 0.0
        %2349 = vmatpush1.msra.mxu0 %v1658
        %2350 = vmatprep.subr.mxu0 0.0
        %2351 = vmatpush1.msra.mxu0 %v1659
        %2352 = vmatprep.subr.mxu0 0.0
        %2353 = vmatpush1.msra.mxu0 %v1660
        %2354 = vmatprep.subr.mxu0 0.0
        %2355 = vmatpush1.msra.mxu0 %v1661
        %2356 = vmatprep.subr.mxu0 0.0
        %2357 = vmatpush1.msra.mxu0 %v1662
        %2358 = vmatprep.subr.mxu0 0.0
        %2359 = vmatpush1.msra.mxu0 %v1663
        %2360 = vmatprep.subr.mxu0 0.0
        %2361 = vmatpush1.msra.mxu0 %v1664
        %2362 = vmatprep.subr.mxu0 0.0
        %2363 = vmatpush1.msra.mxu0 %v1665
        %2364 = vmatprep.subr.mxu0 0.0
        %2365 = vmatpush1.msra.mxu0 %v1666
        %2366 = vmatprep.subr.mxu0 0.0
        %2367 = vmatpush1.msra.mxu0 %v1667
        %2368 = vmatprep.subr.mxu0 0.0
        %2369 = vmatpush1.msra.mxu0 %v1668
        %2370 = vmatprep.subr.mxu0 0.0
        %2371 = vmatpush1.msra.mxu0 %v1669
        %2372 = vmatprep.subr.mxu0 0.0
        %2373 = vmatpush1.msra.mxu0 %v1670
        %2374 = vmatprep.mubr.f32.mxu0 %v2117
        %2375 = vmatmul.mubr.f32.gmra.mrb[0].mxu0 %v2116
        %v2376 = vpop.f32.mrb[0].mxu0
        %v2377 = vadd.f32 %v2292, %v2376
        %v2378 = vpop.f32.mrb[0].mxu0
        %2379 = vmatprep.mubr.f32.mxu0 %v2124
        %2380 = vmatmul.mubr.f32.gmra.mrb[0].mxu0 %v2123
        %v2381 = vpop.f32.mrb[0].mxu0
        %v2382 = vadd.f32 %v2297, %v2381
        %v2383 = vpop.f32.mrb[0].mxu0
        %2384 = vmatprep.mubr.f32.mxu0 %v2131
        %2385 = vmatmul.mubr.f32.gmra.mrb[0].mxu0 %v2130
        %v2386 = vpop.f32.mrb[0].mxu0
        %v2387 = vadd.f32 %v2302, %v2386
        %v2388 = vpop.f32.mrb[0].mxu0
        %2389 = vmatprep.mubr.f32.mxu0 %v2138
        %2390 = vmatmul.mubr.f32.gmra.mrb[0].mxu0 %v2137
        %v2391 = vpop.f32.mrb[0].mxu0
        %v2392 = vadd.f32 %v2307, %v2391
        %v2393 = vpop.f32.mrb[0].mxu0
        %2394 = vdwg.mxu0
        %2395 = vmatprep.subr.mxu0 0.0
        %2396 = vmatpush1.msra.mxu0 %v1671
        %2397 = vmatprep.subr.mxu0 0.0
        %2398 = vmatpush1.msra.mxu0 %v1672
        %2399 = vmatprep.subr.mxu0 0.0
        %2400 = vmatpush1.msra.mxu0 %v1673
        %2401 = vmatprep.subr.mxu0 0.0
        %2402 = vmatpush1.msra.mxu0 %v1674
        %2403 = vmatprep.subr.mxu0 0.0
        %2404 = vmatpush1.msra.mxu0 %v1675
        %2405 = vmatprep.subr.mxu0 0.0
        %2406 = vmatpush1.msra.mxu0 %v1676
        %2407 = vmatprep.subr.mxu0 0.0
        %2408 = vmatpush1.msra.mxu0 %v1677
        %2409 = vmatprep.subr.mxu0 0.0
        %2410 = vmatpush1.msra.mxu0 %v1678
        %2411 = vmatprep.subr.mxu0 0.0
        %2412 = vmatpush1.msra.mxu0 %v1679
        %2413 = vmatprep.subr.mxu0 0.0
        %2414 = vmatpush1.msra.mxu0 %v1680
        %2415 = vmatprep.subr.mxu0 0.0
        %2416 = vmatpush1.msra.mxu0 %v1681
        %2417 = vmatprep.subr.mxu0 0.0
        %2418 = vmatpush1.msra.mxu0 %v1682
        %2419 = vmatprep.subr.mxu0 0.0
        %2420 = vmatpush1.msra.mxu0 %v1683
        %2421 = vmatprep.subr.mxu0 0.0
        %2422 = vmatpush1.msra.mxu0 %v1684
        %2423 = vmatprep.subr.mxu0 0.0
        %2424 = vmatpush1.msra.mxu0 %v1685
        %2425 = vmatprep.subr.mxu0 0.0
        %2426 = vmatpush1.msra.mxu0 %v1686
        %2427 = vmatprep.subr.mxu0 0.0
        %2428 = vmatpush1.msra.mxu0 0.0
        %2429 = vmatprep.subr.mxu0 0.0
        %2430 = vmatpush1.msra.mxu0 0.0
        %2431 = vmatprep.subr.mxu0 0.0
        %2432 = vmatpush1.msra.mxu0 0.0
        %2433 = vmatprep.subr.mxu0 0.0
        %2434 = vmatpush1.msra.mxu0 0.0
        %2435 = vmatprep.subr.mxu0 0.0
        %2436 = vmatpush1.msra.mxu0 0.0
        %2437 = vmatprep.subr.mxu0 0.0
        %2438 = vmatpush1.msra.mxu0 0.0
        %2439 = vmatprep.subr.mxu0 0.0
        %2440 = vmatpush1.msra.mxu0 0.0
        %2441 = vmatprep.subr.mxu0 0.0
        %2442 = vmatpush1.msra.mxu0 0.0
        %2443 = vmatprep.subr.mxu0 0.0
        %2444 = vmatpush1.msra.mxu0 0.0
        %2445 = vmatprep.subr.mxu0 0.0
        %2446 = vmatpush1.msra.mxu0 0.0
        %2447 = vmatprep.subr.mxu0 0.0
        %2448 = vmatpush1.msra.mxu0 0.0
        %2449 = vmatprep.subr.mxu0 0.0
        %2450 = vmatpush1.msra.mxu0 0.0
        %2451 = vmatprep.subr.mxu0 0.0
        %2452 = vmatpush1.msra.mxu0 0.0
        %2453 = vmatprep.subr.mxu0 0.0
        %2454 = vmatpush1.msra.mxu0 0.0
        %2455 = vmatprep.subr.mxu0 0.0
        %2456 = vmatpush1.msra.mxu0 0.0
        %2457 = vmatprep.subr.mxu0 0.0
        %2458 = vmatpush1.msra.mxu0 0.0
        %2459 = vmatprep.mubr.f32.mxu0 0.0
        %2460 = vmatmul.mubr.f32.gmra.mrb[0].mxu0 %v2118
        %v2461 = vpop.f32.mrb[0].mxu0
        %v2462 = vadd.f32 %v2377, %v2461
        %v2463 = vpop.f32.mrb[0].mxu0
        %2464 = vmatprep.mubr.f32.mxu0 0.0
        %2465 = vmatmul.mubr.f32.gmra.mrb[0].mxu0 %v2125
        %v2466 = vpop.f32.mrb[0].mxu0
        %v2467 = vadd.f32 %v2382, %v2466
        %v2468 = vpop.f32.mrb[0].mxu0
        %2469 = vmatprep.mubr.f32.mxu0 0.0
        %2470 = vmatmul.mubr.f32.gmra.mrb[0].mxu0 %v2132
        %v2471 = vpop.f32.mrb[0].mxu0
        %v2472 = vadd.f32 %v2387, %v2471
        %v2473 = vpop.f32.mrb[0].mxu0
        %2474 = vmatprep.mubr.f32.mxu0 0.0
        %2475 = vmatmul.mubr.f32.gmra.mrb[0].mxu0 %v2139
        %v2476 = vpop.f32.mrb[0].mxu0
        %v2477 = vadd.f32 %v2392, %v2476
        %v2478 = vpop.f32.mrb[0].mxu0
        %2479 = vdwg.mxu0
        %vm2480 = vcmask 7168
        %v2481 = vsel %vm2480, %v2065, 0.0
        %v2482 = vsel %vm2480, %v2070, 0.0
        %v2483 = vadd.f32 %v2481, %v2482
        %v2484 = vsel %vm2480, %v2075, 0.0
        %v2485 = vadd.f32 %v2483, %v2484
        %v2486 = vsel %vm2480, %v2080, 0.0
        %v2487 = vadd.f32 %v2485, %v2486
        %v2488 = vrot.slane %v2487, 4
        %v2489 = vadd.f32 %v2487, %v2488
        %v2490 = vrot.slane %v2489, 2
        %v2491 = vadd.f32 %v2489, %v2490
        %v2492 = vrot.slane %v2491, 1
        %v2493 = vadd.f32 %v2491, %v2492
        %v2494 = vsel %vm2480, %v2462, 0.0
        %v2495 = vsel %vm2480, %v2467, 0.0
        %v2496 = vadd.f32 %v2494, %v2495
        %v2497 = vsel %vm2480, %v2472, 0.0
        %v2498 = vadd.f32 %v2496, %v2497
        %v2499 = vsel %vm2480, %v2477, 0.0
        %v2500 = vadd.f32 %v2498, %v2499
        %v2501 = vrot.slane %v2500, 4
        %v2502 = vadd.f32 %v2500, %v2501
        %v2503 = vrot.slane %v2502, 2
        %v2504 = vadd.f32 %v2502, %v2503
        %v2505 = vrot.slane %v2504, 1
        %v2506 = vadd.f32 %v2504, %v2505
        %2508 = vrot.lane.b32.xlu0 %v2506, 1
        %v2509 = vpop.permute.xlu0 %2508
        %v2511 = vsel %vm2480, %v2493, %v2509
        %v2512 = vld [vmem:[%s7] sm:$0x1]
        %v2513 = vadd.f32 %v2511, %v2512
        %vm2514 = vcmask 8192
        %2515 = vst.msk [vmem:[%s298] sm:$0x1] %vm2514, %v2513
        %s2516 = sand.u32 %s203, 1
        %s2517 = scalar_lea.sflag [#allocation3], %s2516
        %s2518 = sand.u32 %s203, 1
        %s2519 = scalar_lea.vmem [#allocation2], %s2518
        // Predicated region
        $region53: #{tpu_custom_call.1} parent=51 // pred_check
          %p2520 = pneg %p213
        $region54: #{tpu_custom_call.1} parent=51 // pred_check_branch
          %2522 = sbr.rel (%p2520) target = $region56
        $region55: #{tpu_custom_call.1} parent=51 // pred_region
          %s2524 = ssub.s32 16, 16
          %2525 = vsyncadd %s2517, %s2524
          %s2526 = smul.addr %s22, 16
          %s2527 = scalar_lea.hbm %s8, %s2526
          %s2529 = sshll.u32 %s2519, 4
          %s2530 = int_to_ptr.vmem [resolvable:$true] %s2529
          %2532 = dma.vmem_to_hbm [thread:$0]  %s2530, 16, %s2527, %s2517
        $region56: #{tpu_custom_call.1} parent=51 // pred_fallthru
          _
      $region52: #{tpu_custom_call.1} parent=5 // pred_fallthru
        _
      %p2533 = scmp.le.s32.totalorder 2, %s17
      // Predicated region
      $region57: #{tpu_custom_call.1} parent=5 // pred_check
        %p2534 = pneg %p2533
      $region58: #{tpu_custom_call.1} parent=5 // pred_check_branch
        %2536 = sbr.rel (%p2534) target = $region60
      $region59: #{tpu_custom_call.1} parent=5 // pred_region
        %s2537 = ssub.s32 %s17, 2
        // Predicated region
        $region61: #{tpu_custom_call.1} parent=59 // pred_check
          %p2538 = pneg %p219
        $region62: #{tpu_custom_call.1} parent=59 // pred_check_branch
          %2540 = sbr.rel (%p2538) target = $region64
        $region63: #{tpu_custom_call.1} parent=59 // pred_region
          %s2541 = sand.u32 %s204, 1
          %s2542 = scalar_lea.sflag [#allocation3], %s2541
          %s2543 = sand.u32 %s204, 1
          %s2544 = scalar_lea.vmem [#allocation2], %s2543
          %2545 = dma.done %s2542, 16
        $region64: #{tpu_custom_call.1} parent=59 // pred_fallthru
          _
      $region60: #{tpu_custom_call.1} parent=5 // pred_fallthru
        _
    $region6: #{tpu_custom_call.1} parent=1 // loop_footer
      %s21 = sadd.s32 1, %s17
    $region7: #{tpu_custom_call.1} parent=1 // loop_footer_branch
      %16 = sbr.rel target = $region3
    $region8: #{tpu_custom_call.1} parent=1 // loop_exit
      _
    %2546 = vsyncpa [#allocation3], 1
    %s2547 = scalar_lea.sflag [#allocation3], 1
    %2548 = vsyncpa %s2547, 1

</llo_original>
